<compile_context>
chip_gen: v7x
topology: tpu7x:2x2x1
jax: 0.10.0
libtpu: 0.0.40
codegen_flags: <defaults>
</compile_context>

<pallas_src>
import jax
import jax.numpy as jnp
from jax.experimental import pallas as pl
from jax.experimental.pallas import tpu as pltpu

BN_EPS = 1e-5
CORRECTION = 0.15


def osme_mamc_kernel(x_ref, w1t_ref, b1_ref, w2_ref, b2_ref, wfct_ref,
                     bfc_ref, wc_ref, bc_ref, out_ref, fc_ref, att_ref):
    a = pl.program_id(1)                                  # attention-head index
    x = x_ref[...]                                        # (tb, HW, C) f32
    tb, hw, c = x.shape

    # --- attention branch `a` ------------------------------------------------
    # 1x1 conv (C -> C) with eval-mode BN folded into weights/bias, then ReLU.
    # Default MXU precision (bf16 passes, f32 accumulate).
    h = jax.lax.dot_general(x, w1t_ref[...], (((2,), (0,)), ((), ())),
                            preferred_element_type=jnp.float32)       # (tb,HW,C)
    h = jnp.maximum(h + b1_ref[...], 0.0)

    # 1x1 conv (C -> 1) + sigmoid, as a batched M=1 matmul: the channel
    # contraction runs on the MXU and the attention map comes out lane-dense
    # along HW (no (...,1) masked stores).
    w2b = jnp.broadcast_to(w2_ref[...][None, :, :], (tb, 1, c))       # (tb,1,C)
    logit = jax.lax.dot_general(w2b, h, (((2,), (2,)), ((0,), (0,))),
                                preferred_element_type=jnp.float32)   # (tb,1,HW)
    att = jax.nn.sigmoid(logit + b2_ref[...])                         # (tb,1,HW)
    att_ref[...] = att

    # attended feature + AdaptiveAvgPool2d(1): contract HW on the MXU.
    pooled = jax.lax.dot_general(att, x, (((2,), (1,)), ((0,), (0,))),
                                 preferred_element_type=jnp.float32)  # (tb,1,C)
    pooled = pooled * (1.0 / hw)

    # per-head FC (C -> 512).
    fc = jax.lax.dot_general(pooled, wfct_ref[...], (((2,), (0,)), ((), ())),
                             preferred_element_type=jnp.float32) + bfc_ref[...]
    fc_ref[...] = fc                                                  # (tb,1,512)

    # --- classifier partial sum over heads -----------------------------------
    part = jax.lax.dot_general(fc, wc_ref[...], (((2,), (0,)), ((), ())),
                               preferred_element_type=jnp.float32)    # (tb,1,2)

    @pl.when(a == 0)
    def _():
        out_ref[...] = jnp.broadcast_to(bc_ref[...], out_ref.shape)

    out_ref[...] = out_ref[...] + part

    @pl.when(a == pl.num_programs(1) - 1)
    def _():
        col = jax.lax.broadcasted_iota(jnp.int32, out_ref.shape, 2)
        out_ref[...] = out_ref[...] - jnp.where(
            col == 1, jnp.float32(CORRECTION), jnp.float32(0.0))


@jax.jit
def osme_mamc_forward(x_nchw, params):
    """OSME/MAMC forward. Returns (output (B,2), fc_outs (A,B,512), att_maps (A,B,1,H,W))."""
    B, C, H, W = x_nchw.shape
    HW = H * W
    A = params["w1"].shape[0]

    # ---- host-side parameter preparation ------------------------------------
    # Fold eval-mode BatchNorm (running stats) and the conv bias into the
    # 1x1-conv weights:  y = ((Wx + b) - mean) * g/sqrt(v+eps) + beta
    #                      = (W * s) x + ((b - mean) * s + beta),  s = g/sqrt(v+eps)
    scale = params["gamma"] * jax.lax.rsqrt(params["var"] + BN_EPS)    # (A, C)
    w1_f = params["w1"] * scale[:, :, None]                            # (A, Cout, Cin)
    b1_f = ((params["b1"] - params["mean"]) * scale + params["beta"])  # (A, C)

    w1t_f = jnp.transpose(w1_f, (0, 2, 1))                 # (A, C_in, C_out)
    b1_f = b1_f.reshape(A, 1, C)
    w2 = params["w2"].reshape(A, 1, C)
    b2 = params["b2"].reshape(A, 1, 1)
    wfct = jnp.transpose(params["wfc"], (0, 2, 1))         # (A, C, 512)
    bfc = params["bfc"].reshape(A, 1, 512)
    wc = jnp.transpose(params["wcls"], (1, 0)).reshape(A, 512, 2)
    bc = params["bcls"].reshape(1, 2)

    # NCHW -> channel-last (B, HW, C): C on the lane axis for the big matmuls.
    x = jnp.transpose(x_nchw, (0, 2, 3, 1)).reshape(B, HW, C)

    # Batch tiling: gives the pipeliner / megacore a parallel axis.
    tb = 8 if B % 8 == 0 else B
    assert B % tb == 0
    grid = (B // tb, A)

    flops = (2 * A * B * HW * C * C        # 1x1 conv C->C
             + 4 * A * B * HW * C          # C->1 conv + attended pooling
             + 2 * A * B * C * 512         # per-head FC
             + 2 * A * B * 512 * 2)        # classifier
    bytes_accessed = 4 * (B * HW * C
                          + A * (C * C + 3 * C + 1 + C * 512 + 512 + 512 * 2) + 2
                          + B * 2 + A * B * 512 + A * B * HW)

    out3, fc4, att4 = pl.pallas_call(
        osme_mamc_kernel,
        out_shape=[
            jax.ShapeDtypeStruct((B, 1, 2), jnp.float32),
            jax.ShapeDtypeStruct((A, B, 1, 512), jnp.float32),
            jax.ShapeDtypeStruct((A, B, 1, HW), jnp.float32),   # lane-dense maps
        ],
        grid_spec=pltpu.PrefetchScalarGridSpec(
            num_scalar_prefetch=0,
            grid=grid,
            in_specs=[
                pl.BlockSpec((tb, HW, C), lambda b, a: (b, 0, 0)),     # x
                pl.BlockSpec((None, C, C), lambda b, a: (a, 0, 0)),    # folded w1^T
                pl.BlockSpec((None, 1, C), lambda b, a: (a, 0, 0)),    # folded b1
                pl.BlockSpec((None, 1, C), lambda b, a: (a, 0, 0)),    # w2
                pl.BlockSpec((None, 1, 1), lambda b, a: (a, 0, 0)),    # b2
                pl.BlockSpec((None, C, 512), lambda b, a: (a, 0, 0)),  # wfc^T
                pl.BlockSpec((None, 1, 512), lambda b, a: (a, 0, 0)),  # bfc
                pl.BlockSpec((None, 512, 2), lambda b, a: (a, 0, 0)),  # wc head slice
                pl.BlockSpec((1, 2), lambda b, a: (0, 0)),             # bc
            ],
            out_specs=[
                pl.BlockSpec((tb, 1, 2), lambda b, a: (b, 0, 0)),          # logits (acc over A)
                pl.BlockSpec((None, tb, 1, 512), lambda b, a: (a, b, 0, 0)),
                pl.BlockSpec((None, tb, 1, HW), lambda b, a: (a, b, 0, 0)),
            ],
        ),
        compiler_params=pltpu.CompilerParams(
            dimension_semantics=("parallel", "arbitrary"),
            vmem_limit_bytes=64 * 1024 * 1024),
        cost_estimate=pl.CostEstimate(
            flops=flops, transcendentals=A * B * HW,
            bytes_accessed=bytes_accessed),
    )(x, w1t_f, b1_f, w2, b2, wfct, bfc, wc, bc)

    out = out3.reshape(B, 2)
    fc_outs = fc4.reshape(A, B, 512)
    att_maps = att4.reshape(A, B, 1, H, W)   # PyTorch per-head shape (B, 1, H, W)
    return out, fc_outs, att_maps


def make_params(key, in_channels, attention_num):
    """Deterministic synthetic parameters, shapes follow the PyTorch __init__."""
    A, C = attention_num, in_channels
    ks = jax.random.split(key, 12)

    w1 = 0.2 * jax.random.normal(ks[0], (A, C, C), jnp.float32)       # conv1 (out,in)
    b1 = 0.1 * jax.random.normal(ks[1], (A, C), jnp.float32)
    gamma = 1.0 + 0.1 * jax.random.normal(ks[2], (A, C), jnp.float32)
    beta = 0.1 * jax.random.normal(ks[3], (A, C), jnp.float32)
    mean = 0.1 * jax.random.normal(ks[4], (A, C), jnp.float32)
    var = 0.5 + jax.random.uniform(ks[5], (A, C), jnp.float32)
    w2 = 0.3 * jax.random.normal(ks[6], (A, C), jnp.float32)          # conv2 (1,C)
    b2 = 0.1 * jax.random.normal(ks[7], (A,), jnp.float32)
    wfc = 0.1 * jax.random.normal(ks[8], (A, 512, C), jnp.float32)    # Linear (out,in)
    bfc = 0.05 * jax.random.normal(ks[9], (A, 512), jnp.float32)

    # classifier: Linear(512*A, 2); bias = [-0.3, 0.0]; weight[0, :512] *= 1.15
    wcls = 0.05 * jax.random.normal(ks[10], (2, 512 * A), jnp.float32)
    wcls = wcls.at[0, :512].multiply(1.15)
    bcls = jnp.array([-0.3, 0.0], jnp.float32)

    return {"w1": w1, "b1": b1, "gamma": gamma, "beta": beta, "mean": mean,
            "var": var, "w2": w2, "b2": b2, "wfc": wfc, "bfc": bfc,
            "wcls": wcls, "bcls": bcls}


def reference_forward(x_nchw, params):
    """Pure-JAX reference mirroring the PyTorch forward (eval-mode BN)."""
    B, C, H, W = x_nchw.shape
    HW = H * W
    A = params["w1"].shape[0]
    xf = jnp.transpose(x_nchw, (0, 2, 3, 1)).reshape(B, HW, C)

    fcs, atts = [], []
    for a in range(A):
        h = jnp.einsum("bpc,oc->bpo", xf, params["w1"][a]) + params["b1"][a]
        h = (h - params["mean"][a]) * (
            params["gamma"][a] / jnp.sqrt(params["var"][a] + BN_EPS)
        ) + params["beta"][a]
        h = jnp.maximum(h, 0.0)
        logit = jnp.einsum("bpc,c->bp", h, params["w2"][a]) + params["b2"][a]
        att = jax.nn.sigmoid(logit)                          # (B, HW)
        pooled = jnp.mean(xf * att[:, :, None], axis=1)      # (B, C)
        fc = pooled @ params["wfc"][a].T + params["bfc"][a]
        fcs.append(fc)
        atts.append(att.reshape(B, 1, H, W))
    combined = jnp.concatenate(fcs, axis=-1)
    out = combined @ params["wcls"].T + params["bcls"]
    out = out.at[:, 1].add(-CORRECTION)
    return out, jnp.stack(fcs, 0), jnp.stack(atts, 0)


if __name__ == "__main__":
    B, C, H, W = 2, 4, 16, 16
    A = 2

    key = jax.random.PRNGKey(0)
    kx, kp = jax.random.split(key)
    x = jax.random.normal(kx, (B, C, H, W), jnp.float32)
    params = make_params(kp, C, A)

    out, fc_outs, att_maps = jax.block_until_ready(osme_mamc_forward(x, params))

    assert out.shape == (B, 2)
    assert fc_outs.shape == (A, B, 512)
    assert att_maps.shape == (A, B, 1, H, W)

    # Tolerance accounts for default (bf16-pass) MXU precision vs. the
    # f32 reference and the BN folding / per-head classifier summation order.
    ref_out, ref_fc, ref_att = reference_forward(x, params)
    assert jnp.allclose(out, ref_out, atol=1e-2, rtol=1e-2), (out, ref_out)
    assert jnp.allclose(fc_outs, ref_fc, atol=1e-2, rtol=1e-2)
    assert jnp.allclose(att_maps, ref_att, atol=1e-2, rtol=1e-2)

    print("KERNEL_OK")
</pallas_src>

<mosaic_0001>
module attributes {stable_mosaic.version = 11 : i64} {
  func.func @osme_mamc_kernel(%arg0: i32, %arg1: i32, %arg2: memref<2x256x4xf32, #tpu.memory_space<vmem>>, %arg3: memref<1x4x4xf32, #tpu.memory_space<vmem>>, %arg4: memref<1x1x4xf32, #tpu.memory_space<vmem>>, %arg5: memref<1x1x4xf32, #tpu.memory_space<vmem>>, %arg6: memref<1x1x1xf32, #tpu.memory_space<vmem>>, %arg7: memref<1x4x512xf32, #tpu.memory_space<vmem>>, %arg8: memref<1x1x512xf32, #tpu.memory_space<vmem>>, %arg9: memref<1x512x2xf32, #tpu.memory_space<vmem>>, %arg10: memref<1x2xf32, #tpu.memory_space<vmem>>, %arg11: memref<2x1x2xf32, #tpu.memory_space<vmem>>, %arg12: memref<1x2x1x512xf32, #tpu.memory_space<vmem>>, %arg13: memref<1x2x1x256xf32, #tpu.memory_space<vmem>>) attributes {dimension_semantics = [#tpu.dimension_semantics<parallel>, #tpu.dimension_semantics<arbitrary>], iteration_bounds = array<i64: 1, 2>, scalar_prefetch = 0 : i64, scratch_operands = 0 : i64, tpu.core_type = #tpu.core_type<tc>, window_params = [{transform_indices = @transform_0, window_bounds = array<i64: 2, 256, 4>}, {transform_indices = @transform_1, window_bounds = array<i64: 1, 4, 4>}, {transform_indices = @transform_2, window_bounds = array<i64: 1, 1, 4>}, {transform_indices = @transform_3, window_bounds = array<i64: 1, 1, 4>}, {transform_indices = @transform_4, window_bounds = array<i64: 1, 1, 1>}, {transform_indices = @transform_5, window_bounds = array<i64: 1, 4, 512>}, {transform_indices = @transform_6, window_bounds = array<i64: 1, 1, 512>}, {transform_indices = @transform_7, window_bounds = array<i64: 1, 512, 2>}, {pipeline_mode = #tpu.pipeline_mode<synchronous>, transform_indices = @transform_8, window_bounds = array<i64: 1, 2>}, {transform_indices = @transform_9, window_bounds = array<i64: 2, 1, 2>}, {transform_indices = @transform_10, window_bounds = array<i64: 1, 2, 1, 512>}, {transform_indices = @transform_11, window_bounds = array<i64: 1, 2, 1, 256>}]} {
    %c0 = arith.constant 0 : index
    %c0_0 = arith.constant 0 : index
    %c0_1 = arith.constant 0 : index
    %0 = vector.load %arg2[%c0, %c0_0, %c0_1] : memref<2x256x4xf32, #tpu.memory_space<vmem>>, vector<2x256x4xf32>
    %c0_2 = arith.constant 0 : index
    %c0_3 = arith.constant 0 : index
    %c0_4 = arith.constant 0 : index
    %1 = vector.load %arg3[%c0_2, %c0_3, %c0_4] : memref<1x4x4xf32, #tpu.memory_space<vmem>>, vector<1x4x4xf32>
    %2 = vector.shape_cast %1 : vector<1x4x4xf32> to vector<4x4xf32>
    %cst = arith.constant dense<0.000000e+00> : vector<2x256x4xf32>
    %3 = tpu.matmul %0, %2, %cst {dimension_numbers = #tpu.dot_dimension_numbers<[2], [0], [0, 1], [1], [0, 0, 0, 1, 1, 1], [], []>} : vector<2x256x4xf32>, vector<4x4xf32>, vector<2x256x4xf32> -> vector<2x256x4xf32>
    %c0_5 = arith.constant 0 : index
    %c0_6 = arith.constant 0 : index
    %c0_7 = arith.constant 0 : index
    %4 = vector.load %arg4[%c0_5, %c0_6, %c0_7] : memref<1x1x4xf32, #tpu.memory_space<vmem>>, vector<1x1x4xf32>
    %5 = vector.shape_cast %4 : vector<1x1x4xf32> to vector<1x4xf32>
    %6 = vector.shape_cast %5 : vector<1x4xf32> to vector<1x1x4xf32>
    %7 = vector.broadcast %6 : vector<1x1x4xf32> to vector<2x256x4xf32>
    %8 = arith.addf %3, %7 : vector<2x256x4xf32>
    %cst_8 = arith.constant 0.000000e+00 : f32
    %9 = vector.broadcast %cst_8 : f32 to vector<2x256x4xf32>
    %10 = arith.maximumf %8, %9 : vector<2x256x4xf32>
    %c0_9 = arith.constant 0 : index
    %c0_10 = arith.constant 0 : index
    %c0_11 = arith.constant 0 : index
    %11 = vector.load %arg5[%c0_9, %c0_10, %c0_11] : memref<1x1x4xf32, #tpu.memory_space<vmem>>, vector<1x1x4xf32>
    %12 = vector.shape_cast %11 : vector<1x1x4xf32> to vector<1x4xf32>
    %13 = vector.shape_cast %12 : vector<1x4xf32> to vector<1x1x4xf32>
    %14 = vector.shape_cast %13 : vector<1x1x4xf32> to vector<1x1x4xf32>
    %15 = vector.broadcast %14 : vector<1x1x4xf32> to vector<2x1x4xf32>
    %cst_12 = arith.constant dense<0.000000e+00> : vector<2x1x256xf32>
    %16 = tpu.matmul %15, %10, %cst_12 {dimension_numbers = #tpu.dot_dimension_numbers<[2], [2], [1], [1], [0, 0, 0, 1, 1, 1], [0], [0]>} : vector<2x1x4xf32>, vector<2x256x4xf32>, vector<2x1x256xf32> -> vector<2x1x256xf32>
    %c0_13 = arith.constant 0 : index
    %c0_14 = arith.constant 0 : index
    %c0_15 = arith.constant 0 : index
    %17 = vector.load %arg6[%c0_13, %c0_14, %c0_15] : memref<1x1x1xf32, #tpu.memory_space<vmem>>, vector<1x1x1xf32>
    %18 = vector.shape_cast %17 : vector<1x1x1xf32> to vector<1x1xf32>
    %19 = vector.shape_cast %18 : vector<1x1xf32> to vector<1x1x1xf32>
    %20 = vector.broadcast %19 : vector<1x1x1xf32> to vector<2x1x256xf32>
    %21 = arith.addf %16, %20 : vector<2x1x256xf32>
    %22 = arith.negf %21 : vector<2x1x256xf32>
    %23 = math.exp %22 : vector<2x1x256xf32>
    %cst_16 = arith.constant 1.000000e+00 : f32
    %24 = vector.broadcast %cst_16 : f32 to vector<2x1x256xf32>
    %25 = arith.addf %24, %23 : vector<2x1x256xf32>
    %26 = arith.divf %24, %25 : vector<2x1x256xf32>
    %c0_17 = arith.constant 0 : index
    %c0_18 = arith.constant 0 : index
    %c0_19 = arith.constant 0 : index
    %c0_20 = arith.constant 0 : index
    %27 = vector.load %arg13[%c0_17, %c0_18, %c0_19, %c0_20] : memref<1x2x1x256xf32, #tpu.memory_space<vmem>>, vector<1x2x1x256xf32>
    %28 = vector.shape_cast %27 : vector<1x2x1x256xf32> to vector<2x1x256xf32>
    %29 = vector.shape_cast %26 : vector<2x1x256xf32> to vector<1x2x1x256xf32>
    tpu.vector_store %arg13[%c0_17, %c0_18, %c0_19, %c0_20], %29 {strides = array<i32>} : memref<1x2x1x256xf32, #tpu.memory_space<vmem>>, vector<1x2x1x256xf32>,
    %cst_21 = arith.constant dense<0.000000e+00> : vector<2x1x4xf32>
    %30 = tpu.matmul %26, %0, %cst_21 {dimension_numbers = #tpu.dot_dimension_numbers<[2], [1], [1], [2], [0, 0, 0, 1, 1, 2], [0], [0]>} : vector<2x1x256xf32>, vector<2x256x4xf32>, vector<2x1x4xf32> -> vector<2x1x4xf32>
    %cst_22 = arith.constant 3.906250e-03 : f32
    %31 = vector.broadcast %cst_22 : f32 to vector<2x1x4xf32>
    %32 = arith.mulf %30, %31 : vector<2x1x4xf32>
    %c0_23 = arith.constant 0 : index
    %c0_24 = arith.constant 0 : index
    %c0_25 = arith.constant 0 : index
    %33 = vector.load %arg7[%c0_23, %c0_24, %c0_25] : memref<1x4x512xf32, #tpu.memory_space<vmem>>, vector<1x4x512xf32>
    %34 = vector.shape_cast %33 : vector<1x4x512xf32> to vector<4x512xf32>
    %cst_26 = arith.constant dense<0.000000e+00> : vector<2x1x512xf32>
    %35 = tpu.matmul %32, %34, %cst_26 {dimension_numbers = #tpu.dot_dimension_numbers<[2], [0], [0, 1], [1], [0, 0, 0, 1, 1, 1], [], []>} : vector<2x1x4xf32>, vector<4x512xf32>, vector<2x1x512xf32> -> vector<2x1x512xf32>
    %c0_27 = arith.constant 0 : index
    %c0_28 = arith.constant 0 : index
    %c0_29 = arith.constant 0 : index
    %36 = vector.load %arg8[%c0_27, %c0_28, %c0_29] : memref<1x1x512xf32, #tpu.memory_space<vmem>>, vector<1x1x512xf32>
    %37 = vector.shape_cast %36 : vector<1x1x512xf32> to vector<1x512xf32>
    %38 = vector.shape_cast %37 : vector<1x512xf32> to vector<1x1x512xf32>
    %39 = vector.broadcast %38 : vector<1x1x512xf32> to vector<2x1x512xf32>
    %40 = arith.addf %35, %39 : vector<2x1x512xf32>
    %c0_30 = arith.constant 0 : index
    %c0_31 = arith.constant 0 : index
    %c0_32 = arith.constant 0 : index
    %c0_33 = arith.constant 0 : index
    %41 = vector.load %arg12[%c0_30, %c0_31, %c0_32, %c0_33] : memref<1x2x1x512xf32, #tpu.memory_space<vmem>>, vector<1x2x1x512xf32>
    %42 = vector.shape_cast %41 : vector<1x2x1x512xf32> to vector<2x1x512xf32>
    %43 = vector.shape_cast %40 : vector<2x1x512xf32> to vector<1x2x1x512xf32>
    tpu.vector_store %arg12[%c0_30, %c0_31, %c0_32, %c0_33], %43 {strides = array<i32>} : memref<1x2x1x512xf32, #tpu.memory_space<vmem>>, vector<1x2x1x512xf32>,
    %c0_34 = arith.constant 0 : index
    %c0_35 = arith.constant 0 : index
    %c0_36 = arith.constant 0 : index
    %44 = vector.load %arg9[%c0_34, %c0_35, %c0_36] : memref<1x512x2xf32, #tpu.memory_space<vmem>>, vector<1x512x2xf32>
    %45 = vector.shape_cast %44 : vector<1x512x2xf32> to vector<512x2xf32>
    %cst_37 = arith.constant dense<0.000000e+00> : vector<2x1x2xf32>
    %46 = tpu.matmul %40, %45, %cst_37 {dimension_numbers = #tpu.dot_dimension_numbers<[2], [0], [0, 1], [1], [0, 0, 0, 1, 1, 1], [], []>} : vector<2x1x512xf32>, vector<512x2xf32>, vector<2x1x2xf32> -> vector<2x1x2xf32>
    %c0_i32 = arith.constant 0 : i32
    %47 = arith.cmpi eq, %arg1, %c0_i32 : i32
    %48 = arith.extui %47 : i1 to i32
    %c0_i32_38 = arith.constant 0 : i32
    %49 = arith.cmpi ne, %48, %c0_i32_38 : i32
    scf.if %49 {
      %c0_46 = arith.constant 0 : index
      %c0_47 = arith.constant 0 : index
      %56 = vector.load %arg10[%c0_46, %c0_47] : memref<1x2xf32, #tpu.memory_space<vmem>>, vector<1x2xf32>
      %57 = vector.shape_cast %56 : vector<1x2xf32> to vector<1x1x2xf32>
      %58 = vector.broadcast %57 : vector<1x1x2xf32> to vector<2x1x2xf32>
      %c0_48 = arith.constant 0 : index
      %c0_49 = arith.constant 0 : index
      %c0_50 = arith.constant 0 : index
      %59 = vector.load %arg11[%c0_48, %c0_49, %c0_50] : memref<2x1x2xf32, #tpu.memory_space<vmem>>, vector<2x1x2xf32>
      tpu.vector_store %arg11[%c0_48, %c0_49, %c0_50], %58 {strides = array<i32>} : memref<2x1x2xf32, #tpu.memory_space<vmem>>, vector<2x1x2xf32>,
    } else {
    }
    %c0_39 = arith.constant 0 : index
    %c0_40 = arith.constant 0 : index
    %c0_41 = arith.constant 0 : index
    %50 = vector.load %arg11[%c0_39, %c0_40, %c0_41] : memref<2x1x2xf32, #tpu.memory_space<vmem>>, vector<2x1x2xf32>
    %51 = arith.addf %50, %46 : vector<2x1x2xf32>
    %c0_42 = arith.constant 0 : index
    %c0_43 = arith.constant 0 : index
    %c0_44 = arith.constant 0 : index
    %52 = vector.load %arg11[%c0_42, %c0_43, %c0_44] : memref<2x1x2xf32, #tpu.memory_space<vmem>>, vector<2x1x2xf32>
    tpu.vector_store %arg11[%c0_42, %c0_43, %c0_44], %51 {strides = array<i32>} : memref<2x1x2xf32, #tpu.memory_space<vmem>>, vector<2x1x2xf32>,
    %c1_i32 = arith.constant 1 : i32
    %53 = arith.cmpi eq, %arg1, %c1_i32 : i32
    %54 = arith.extui %53 : i1 to i32
    %c0_i32_45 = arith.constant 0 : i32
    %55 = arith.cmpi ne, %54, %c0_i32_45 : i32
    scf.if %55 {
      %56 = tpu.iota {dimensions = array<i32: 2>} : vector<2x1x2xi32>
      %c0_46 = arith.constant 0 : index
      %c0_47 = arith.constant 0 : index
      %c0_48 = arith.constant 0 : index
      %57 = vector.load %arg11[%c0_46, %c0_47, %c0_48] : memref<2x1x2xf32, #tpu.memory_space<vmem>>, vector<2x1x2xf32>
      %c1_i32_49 = arith.constant 1 : i32
      %58 = vector.broadcast %c1_i32_49 : i32 to vector<2x1x2xi32>
      %59 = arith.cmpi eq, %56, %58 : vector<2x1x2xi32>
      %cst_50 = arith.constant 1.500000e-01 : f32
      %cst_51 = arith.constant 0.000000e+00 : f32
      %60 = vector.broadcast %cst_50 : f32 to vector<2x1x2xf32>
      %61 = vector.broadcast %cst_51 : f32 to vector<2x1x2xf32>
      %62 = arith.select %59, %60, %61 : vector<2x1x2xi1>, vector<2x1x2xf32>
      %63 = arith.subf %57, %62 : vector<2x1x2xf32>
      %c0_52 = arith.constant 0 : index
      %c0_53 = arith.constant 0 : index
      %c0_54 = arith.constant 0 : index
      %64 = vector.load %arg11[%c0_52, %c0_53, %c0_54] : memref<2x1x2xf32, #tpu.memory_space<vmem>>, vector<2x1x2xf32>
      tpu.vector_store %arg11[%c0_52, %c0_53, %c0_54], %63 {strides = array<i32>} : memref<2x1x2xf32, #tpu.memory_space<vmem>>, vector<2x1x2xf32>,
    } else {
    }
    return
  }
  func.func @transform_0(%arg0: i32, %arg1: i32) -> (i32, i32, i32) {
    %c0_i32 = arith.constant 0 : i32
    %c0_i32_0 = arith.constant 0 : i32
    %c0_i32_1 = arith.constant 0 : i32
    return %arg0, %c0_i32, %c0_i32_0 : i32, i32, i32
  }
  func.func @transform_1(%arg0: i32, %arg1: i32) -> (i32, i32, i32) {
    %c0_i32 = arith.constant 0 : i32
    %c0_i32_0 = arith.constant 0 : i32
    %c0_i32_1 = arith.constant 0 : i32
    return %arg1, %c0_i32, %c0_i32_0 : i32, i32, i32
  }
  func.func @transform_2(%arg0: i32, %arg1: i32) -> (i32, i32, i32) {
    %c0_i32 = arith.constant 0 : i32
    %c0_i32_0 = arith.constant 0 : i32
    %c0_i32_1 = arith.constant 0 : i32
    return %arg1, %c0_i32, %c0_i32_0 : i32, i32, i32
  }
  func.func @transform_3(%arg0: i32, %arg1: i32) -> (i32, i32, i32) {
    %c0_i32 = arith.constant 0 : i32
    %c0_i32_0 = arith.constant 0 : i32
    %c0_i32_1 = arith.constant 0 : i32
    return %arg1, %c0_i32, %c0_i32_0 : i32, i32, i32
  }
  func.func @transform_4(%arg0: i32, %arg1: i32) -> (i32, i32, i32) {
    %c0_i32 = arith.constant 0 : i32
    %c0_i32_0 = arith.constant 0 : i32
    %c0_i32_1 = arith.constant 0 : i32
    return %arg1, %c0_i32, %c0_i32_0 : i32, i32, i32
  }
  func.func @transform_5(%arg0: i32, %arg1: i32) -> (i32, i32, i32) {
    %c0_i32 = arith.constant 0 : i32
    %c0_i32_0 = arith.constant 0 : i32
    %c0_i32_1 = arith.constant 0 : i32
    return %arg1, %c0_i32, %c0_i32_0 : i32, i32, i32
  }
  func.func @transform_6(%arg0: i32, %arg1: i32) -> (i32, i32, i32) {
    %c0_i32 = arith.constant 0 : i32
    %c0_i32_0 = arith.constant 0 : i32
    %c0_i32_1 = arith.constant 0 : i32
    return %arg1, %c0_i32, %c0_i32_0 : i32, i32, i32
  }
  func.func @transform_7(%arg0: i32, %arg1: i32) -> (i32, i32, i32) {
    %c0_i32 = arith.constant 0 : i32
    %c0_i32_0 = arith.constant 0 : i32
    %c0_i32_1 = arith.constant 0 : i32
    return %arg1, %c0_i32, %c0_i32_0 : i32, i32, i32
  }
  func.func @transform_8(%arg0: i32, %arg1: i32) -> (i32, i32) {
    %c0_i32 = arith.constant 0 : i32
    %c0_i32_0 = arith.constant 0 : i32
    %c0_i32_1 = arith.constant 0 : i32
    return %c0_i32, %c0_i32_0 : i32, i32
  }
  func.func @transform_9(%arg0: i32, %arg1: i32) -> (i32, i32, i32) {
    %c0_i32 = arith.constant 0 : i32
    %c0_i32_0 = arith.constant 0 : i32
    %c0_i32_1 = arith.constant 0 : i32
    return %arg0, %c0_i32, %c0_i32_0 : i32, i32, i32
  }
  func.func @transform_10(%arg0: i32, %arg1: i32) -> (i32, i32, i32, i32) {
    %c0_i32 = arith.constant 0 : i32
    %c0_i32_0 = arith.constant 0 : i32
    %c0_i32_1 = arith.constant 0 : i32
    return %arg1, %arg0, %c0_i32, %c0_i32_0 : i32, i32, i32, i32
  }
  func.func @transform_11(%arg0: i32, %arg1: i32) -> (i32, i32, i32, i32) {
    %c0_i32 = arith.constant 0 : i32
    %c0_i32_0 = arith.constant 0 : i32
    %c0_i32_1 = arith.constant 0 : i32
    return %arg1, %arg0, %c0_i32, %c0_i32_0 : i32, i32, i32, i32
  }
}

</mosaic_0001>

<llo_original>
// kernel: osme_mamc_forward.1
$region0: #{osme_mamc_forward.1}
  #allocation0 [shape = 'u32[]', space=smem, size = 0x4, offset = 0x4, fixed_abs, tag = 'smem constant byte address 0x4 - core index']
  #allocation1 [shape = 'u32[144,128]{1,0:T(1,128)}', space=vmem, size = 0x12000, scoped, tag = 'internal scratch']
  %s0 = inlined_call_operand.hbm [shape: f32[2,256,4], index: 0, kind: input, shape index: {}]
  %s1 = inlined_call_operand.hbm [shape: f32[2,4,4], index: 1, kind: input, shape index: {}]
  %s2 = inlined_call_operand.hbm [shape: f32[2,1,4], index: 2, kind: input, shape index: {}]
  %s3 = inlined_call_operand.hbm [shape: f32[2,1,4], index: 3, kind: input, shape index: {}]
  %s4 = inlined_call_operand.hbm [shape: f32[2,1,1], index: 4, kind: input, shape index: {}]
  %s5 = inlined_call_operand.hbm [shape: f32[2,4,512], index: 5, kind: input, shape index: {}]
  %s6 = inlined_call_operand.hbm [shape: f32[2,1,512], index: 6, kind: input, shape index: {}]
  %s7 = inlined_call_operand.hbm [shape: f32[2,512,2], index: 7, kind: input, shape index: {}]
  %s8 = inlined_call_operand.hbm [shape: f32[1,2], index: 8, kind: input, shape index: {}]
  %s9 = inlined_call_operand.hbm [shape: f32[2,1,2], index: 9, kind: output, shape index: {0}]
  %s10 = inlined_call_operand.hbm [shape: f32[2,2,1,512], index: 10, kind: output, shape index: {1}]
  %s11 = inlined_call_operand.hbm [shape: f32[2,2,1,256], index: 11, kind: output, shape index: {2}]
  %12 = xla_tuple %s9, %s10, %s11
  %s13 = sld [smem:[#allocation0]]
  $region129: #{osme_mamc_forward.1} parent=0
    _
  %s15 = ssub.s32 1, %s13
  %s16 = scalar_select 0, %s15, %s13
  $region1: #{osme_mamc_forward.1} parent=0
    #allocation2 [shape = 'u8[262144]{0}', space=vmem, size = 0x40000, scoped, tag = 'input window, operand 0, single buffered']
    #allocation3 [shape = 's32[2]{0}', space=sflag, size = 0x8, scoped, tag = 'scoped memory for osme_mamc_forward.1']
    #allocation4 [shape = 's32[2]{0}', space=sflag, size = 0x8, scoped, tag = 'scoped memory for osme_mamc_forward.1']
    #allocation5 [shape = 'u8[4096]{0}', space=vmem, size = 0x1000, scoped, tag = 'input window, operand 1']
    #allocation6 [shape = 's32[2]{0}', space=sflag, size = 0x8, scoped, tag = 'scoped memory for osme_mamc_forward.1']
    #allocation7 [shape = 'u8[1024]{0}', space=vmem, size = 0x400, scoped, tag = 'input window, operand 2']
    #allocation8 [shape = 'u8[1024]{0}', space=vmem, size = 0x400, scoped, tag = 'input window, operand 3']
    #allocation9 [shape = 's32[2]{0}', space=sflag, size = 0x8, scoped, tag = 'scoped memory for osme_mamc_forward.1']
    #allocation10 [shape = 'u8[1024]{0}', space=vmem, size = 0x400, scoped, tag = 'input window, operand 4']
    #allocation11 [shape = 'u8[16384]{0}', space=vmem, size = 0x4000, scoped, tag = 'input window, operand 5']
    #allocation12 [shape = 's32[2]{0}', space=sflag, size = 0x8, scoped, tag = 'scoped memory for osme_mamc_forward.1']
    #allocation13 [shape = 'u8[4096]{0}', space=vmem, size = 0x1000, scoped, tag = 'input window, operand 6']
    #allocation14 [shape = 'u8[524288]{0}', space=vmem, size = 0x80000, scoped, tag = 'input window, operand 7']
    #allocation15 [shape = 's32[2]{0}', space=sflag, size = 0x8, scoped, tag = 'scoped memory for osme_mamc_forward.1']
    #allocation16 [shape = 'u8[512]{0}', space=vmem, size = 0x400, scoped, tag = 'input window, operand 8, single buffered']
    #allocation17 [shape = 'u8[1024]{0}', space=vmem, size = 0x400, scoped, tag = 'output window, operand 0, single buffered']
    #allocation18 [shape = 'u8[8192]{0}', space=vmem, size = 0x2000, scoped, tag = 'output window, operand 1']
    #allocation19 [shape = 's32[2]{0}', space=sflag, size = 0x8, scoped, tag = 'scoped memory for osme_mamc_forward.1']
    #allocation20 [shape = 'u8[4096]{0}', space=vmem, size = 0x1000, scoped, tag = 'output window, operand 2']
    %17 = vsyncpa [#allocation3], 0
    %18 = vsyncpa [#allocation6], 0
    %s19 = scalar_lea.sflag [#allocation6], 1
    %20 = vsyncpa %s19, 0
    %21 = vsyncpa [#allocation9], 0
    %s22 = scalar_lea.sflag [#allocation9], 1
    %23 = vsyncpa %s22, 0
    %24 = vsyncpa [#allocation12], 0
    %s25 = scalar_lea.sflag [#allocation12], 1
    %26 = vsyncpa %s25, 0
    %27 = vsyncpa [#allocation15], 0
    %s28 = scalar_lea.sflag [#allocation15], 1
    %29 = vsyncpa %s28, 0
    %30 = vsyncpa [#allocation4], 0
    %31 = vsyncpa [#allocation19], 0
    %s32 = scalar_lea.sflag [#allocation19], 1
    %33 = vsyncpa %s32, 0
    loop: start=0, step=1, limit=4
    $region2: #{osme_mamc_forward.1} parent=1 // loop_pre_header
      _
    $region3: #{osme_mamc_forward.1} parent=1 // loop_header
      %s35 = sphi 0, %s39
      %p36 = scmp.ge.s32.totalorder %s35, 4
      %s42 = sphi 0, %s54
      %s43 = sphi 0, %s50
      %s44 = sphi 0, %s42
      %s45 = sphi 0, %s43
      %s46 = sphi 0, %s44
      %s47 = sphi 0, %s45
      %s57 = sphi 0, %s59
      %s60 = sphi 0, %s57
      %s61 = sphi 0, %s60
      %s77 = sphi 0, %s61
      %s83 = sphi 0, %s85
      %s86 = sphi 0, %s83
      %s87 = sphi 0, %s86
      %s103 = sphi 0, %s87
      %s109 = sphi 0, %s111
      %s112 = sphi 0, %s109
      %s113 = sphi 0, %s112
      %s129 = sphi 0, %s113
      %s135 = sphi 0, %s137
      %s138 = sphi 0, %s135
      %s139 = sphi 0, %s138
      %s155 = sphi 0, %s139
      %s161 = sphi 0, %s163
      %s164 = sphi 0, %s161
      %s165 = sphi 0, %s164
      %s181 = sphi 0, %s165
      %s187 = sphi 0, %s189
      %s190 = sphi 0, %s187
      %s191 = sphi 0, %s190
      %s207 = sphi 0, %s191
      %s213 = sphi 0, %s215
      %s216 = sphi 0, %s213
      %s217 = sphi 0, %s216
      %s233 = sphi 0, %s217
      %s239 = sphi 0, %s241
      %s242 = sphi 0, %s239
      %s243 = sphi 0, %s242
      %s259 = sphi 0, %s243
      %s263 = sphi 0, %s263
      %s265 = sphi 0, %s263
      %s266 = sphi 0, %s265
      %s280 = sphi 0, %s266
      %s286 = sphi 0, %s288
      %s289 = sphi 0, %s286
      %s290 = sphi 0, %s289
      %s306 = sphi 0, %s290
      %s314 = sphi 0, %s316
      %s317 = sphi 0, %s314
      %s318 = sphi 0, %s317
      %s334 = sphi 0, %s318
      %s342 = sphi 0, %s344
      %s345 = sphi 0, %s342
      %s346 = sphi 0, %s345
      %s362 = sphi 0, %s346
    $region4: #{osme_mamc_forward.1} parent=1 // loop_header_branch
      %38 = sbr.rel (%p36) target = $region8
    $region5: #{osme_mamc_forward.1} parent=1 // loop_body
      %s40 = ssub.s32 %s35, 1
      %s41 = ssub.s32 %s35, 2
      %s48 = sadd.s32 1, %s43
      %p49 = scmp.ge.s32.totalorder %s48, 2
      %s50 = scalar_select %p49, 0, %s48
      %s51 = sadd.s32 1, %s42
      %s52 = scalar_select %p49, %s51, %s42
      %p53 = scmp.ge.s32.totalorder %s52, 1
      %s54 = scalar_select %p53, 0, %s52
      %s55 = ssub.s32 %s42, %s54
      %p56 = scmp.eq.s32.totalorder %s55, 0
      %s58 = sadd.s32 %s57, 1
      %s59 = scalar_select %p56, %s57, %s58
      %p62 = pneg %p56
      %p63 = scmp.eq.s32.totalorder %s35, 1
      %p64 = por %p62, %p63
      %p65 = scmp.ne.s32.totalorder %s57, %s60
      %p66 = scmp.eq.s32.totalorder %s35, 0
      %p67 = por %p65, %p66
      %p68 = scmp.ne.s32.totalorder %s57, %s60
      %p69 = scmp.eq.s32.totalorder %s40, 1
      %p70 = por %p68, %p69
      %p71 = scmp.ne.s32.totalorder %s60, %s61
      %p72 = scmp.eq.s32.totalorder %s40, 0
      %p73 = por %p71, %p72
      %p74 = scmp.ne.s32.totalorder %s60, %s61
      %p75 = scmp.eq.s32.totalorder %s41, 1
      %p76 = por %p74, %p75
      %p78 = scmp.ne.s32.totalorder %s61, %s77
      %p79 = scmp.eq.s32.totalorder %s41, 0
      %p80 = por %p78, %p79
      %s81 = ssub.s32 %s43, %s50
      %p82 = scmp.eq.s32.totalorder %s81, 0
      %s84 = sadd.s32 %s83, 1
      %s85 = scalar_select %p82, %s83, %s84
      %p88 = pneg %p82
      %p89 = scmp.eq.s32.totalorder %s35, 1
      %p90 = por %p88, %p89
      %p91 = scmp.ne.s32.totalorder %s83, %s86
      %p92 = scmp.eq.s32.totalorder %s35, 0
      %p93 = por %p91, %p92
      %p94 = scmp.ne.s32.totalorder %s83, %s86
      %p95 = scmp.eq.s32.totalorder %s40, 1
      %p96 = por %p94, %p95
      %p97 = scmp.ne.s32.totalorder %s86, %s87
      %p98 = scmp.eq.s32.totalorder %s40, 0
      %p99 = por %p97, %p98
      %p100 = scmp.ne.s32.totalorder %s86, %s87
      %p101 = scmp.eq.s32.totalorder %s41, 1
      %p102 = por %p100, %p101
      %p104 = scmp.ne.s32.totalorder %s87, %s103
      %p105 = scmp.eq.s32.totalorder %s41, 0
      %p106 = por %p104, %p105
      %s107 = ssub.s32 %s43, %s50
      %p108 = scmp.eq.s32.totalorder %s107, 0
      %s110 = sadd.s32 %s109, 1
      %s111 = scalar_select %p108, %s109, %s110
      %p114 = pneg %p108
      %p115 = scmp.eq.s32.totalorder %s35, 1
      %p116 = por %p114, %p115
      %p117 = scmp.ne.s32.totalorder %s109, %s112
      %p118 = scmp.eq.s32.totalorder %s35, 0
      %p119 = por %p117, %p118
      %p120 = scmp.ne.s32.totalorder %s109, %s112
      %p121 = scmp.eq.s32.totalorder %s40, 1
      %p122 = por %p120, %p121
      %p123 = scmp.ne.s32.totalorder %s112, %s113
      %p124 = scmp.eq.s32.totalorder %s40, 0
      %p125 = por %p123, %p124
      %p126 = scmp.ne.s32.totalorder %s112, %s113
      %p127 = scmp.eq.s32.totalorder %s41, 1
      %p128 = por %p126, %p127
      %p130 = scmp.ne.s32.totalorder %s113, %s129
      %p131 = scmp.eq.s32.totalorder %s41, 0
      %p132 = por %p130, %p131
      %s133 = ssub.s32 %s43, %s50
      %p134 = scmp.eq.s32.totalorder %s133, 0
      %s136 = sadd.s32 %s135, 1
      %s137 = scalar_select %p134, %s135, %s136
      %p140 = pneg %p134
      %p141 = scmp.eq.s32.totalorder %s35, 1
      %p142 = por %p140, %p141
      %p143 = scmp.ne.s32.totalorder %s135, %s138
      %p144 = scmp.eq.s32.totalorder %s35, 0
      %p145 = por %p143, %p144
      %p146 = scmp.ne.s32.totalorder %s135, %s138
      %p147 = scmp.eq.s32.totalorder %s40, 1
      %p148 = por %p146, %p147
      %p149 = scmp.ne.s32.totalorder %s138, %s139
      %p150 = scmp.eq.s32.totalorder %s40, 0
      %p151 = por %p149, %p150
      %p152 = scmp.ne.s32.totalorder %s138, %s139
      %p153 = scmp.eq.s32.totalorder %s41, 1
      %p154 = por %p152, %p153
      %p156 = scmp.ne.s32.totalorder %s139, %s155
      %p157 = scmp.eq.s32.totalorder %s41, 0
      %p158 = por %p156, %p157
      %s159 = ssub.s32 %s43, %s50
      %p160 = scmp.eq.s32.totalorder %s159, 0
      %s162 = sadd.s32 %s161, 1
      %s163 = scalar_select %p160, %s161, %s162
      %p166 = pneg %p160
      %p167 = scmp.eq.s32.totalorder %s35, 1
      %p168 = por %p166, %p167
      %p169 = scmp.ne.s32.totalorder %s161, %s164
      %p170 = scmp.eq.s32.totalorder %s35, 0
      %p171 = por %p169, %p170
      %p172 = scmp.ne.s32.totalorder %s161, %s164
      %p173 = scmp.eq.s32.totalorder %s40, 1
      %p174 = por %p172, %p173
      %p175 = scmp.ne.s32.totalorder %s164, %s165
      %p176 = scmp.eq.s32.totalorder %s40, 0
      %p177 = por %p175, %p176
      %p178 = scmp.ne.s32.totalorder %s164, %s165
      %p179 = scmp.eq.s32.totalorder %s41, 1
      %p180 = por %p178, %p179
      %p182 = scmp.ne.s32.totalorder %s165, %s181
      %p183 = scmp.eq.s32.totalorder %s41, 0
      %p184 = por %p182, %p183
      %s185 = ssub.s32 %s43, %s50
      %p186 = scmp.eq.s32.totalorder %s185, 0
      %s188 = sadd.s32 %s187, 1
      %s189 = scalar_select %p186, %s187, %s188
      %p192 = pneg %p186
      %p193 = scmp.eq.s32.totalorder %s35, 1
      %p194 = por %p192, %p193
      %p195 = scmp.ne.s32.totalorder %s187, %s190
      %p196 = scmp.eq.s32.totalorder %s35, 0
      %p197 = por %p195, %p196
      %p198 = scmp.ne.s32.totalorder %s187, %s190
      %p199 = scmp.eq.s32.totalorder %s40, 1
      %p200 = por %p198, %p199
      %p201 = scmp.ne.s32.totalorder %s190, %s191
      %p202 = scmp.eq.s32.totalorder %s40, 0
      %p203 = por %p201, %p202
      %p204 = scmp.ne.s32.totalorder %s190, %s191
      %p205 = scmp.eq.s32.totalorder %s41, 1
      %p206 = por %p204, %p205
      %p208 = scmp.ne.s32.totalorder %s191, %s207
      %p209 = scmp.eq.s32.totalorder %s41, 0
      %p210 = por %p208, %p209
      %s211 = ssub.s32 %s43, %s50
      %p212 = scmp.eq.s32.totalorder %s211, 0
      %s214 = sadd.s32 %s213, 1
      %s215 = scalar_select %p212, %s213, %s214
      %p218 = pneg %p212
      %p219 = scmp.eq.s32.totalorder %s35, 1
      %p220 = por %p218, %p219
      %p221 = scmp.ne.s32.totalorder %s213, %s216
      %p222 = scmp.eq.s32.totalorder %s35, 0
      %p223 = por %p221, %p222
      %p224 = scmp.ne.s32.totalorder %s213, %s216
      %p225 = scmp.eq.s32.totalorder %s40, 1
      %p226 = por %p224, %p225
      %p227 = scmp.ne.s32.totalorder %s216, %s217
      %p228 = scmp.eq.s32.totalorder %s40, 0
      %p229 = por %p227, %p228
      %p230 = scmp.ne.s32.totalorder %s216, %s217
      %p231 = scmp.eq.s32.totalorder %s41, 1
      %p232 = por %p230, %p231
      %p234 = scmp.ne.s32.totalorder %s217, %s233
      %p235 = scmp.eq.s32.totalorder %s41, 0
      %p236 = por %p234, %p235
      %s237 = ssub.s32 %s43, %s50
      %p238 = scmp.eq.s32.totalorder %s237, 0
      %s240 = sadd.s32 %s239, 1
      %s241 = scalar_select %p238, %s239, %s240
      %p244 = pneg %p238
      %p245 = scmp.eq.s32.totalorder %s35, 1
      %p246 = por %p244, %p245
      %p247 = scmp.ne.s32.totalorder %s239, %s242
      %p248 = scmp.eq.s32.totalorder %s35, 0
      %p249 = por %p247, %p248
      %p250 = scmp.ne.s32.totalorder %s239, %s242
      %p251 = scmp.eq.s32.totalorder %s40, 1
      %p252 = por %p250, %p251
      %p253 = scmp.ne.s32.totalorder %s242, %s243
      %p254 = scmp.eq.s32.totalorder %s40, 0
      %p255 = por %p253, %p254
      %p256 = scmp.ne.s32.totalorder %s242, %s243
      %p257 = scmp.eq.s32.totalorder %s41, 1
      %p258 = por %p256, %p257
      %p260 = scmp.ne.s32.totalorder %s243, %s259
      %p261 = scmp.eq.s32.totalorder %s41, 0
      %p262 = por %p260, %p261
      %s264 = sadd.s32 %s263, 1
      %p267 = scmp.eq.s32.totalorder %s35, 1
      %p268 = scmp.ne.s32.totalorder %s263, %s265
      %p269 = scmp.eq.s32.totalorder %s35, 0
      %p270 = por %p268, %p269
      %p271 = scmp.ne.s32.totalorder %s263, %s265
      %p272 = scmp.eq.s32.totalorder %s40, 1
      %p273 = por %p271, %p272
      %p274 = scmp.ne.s32.totalorder %s265, %s266
      %p275 = scmp.eq.s32.totalorder %s40, 0
      %p276 = por %p274, %p275
      %p277 = scmp.ne.s32.totalorder %s265, %s266
      %p278 = scmp.eq.s32.totalorder %s41, 1
      %p279 = por %p277, %p278
      %p281 = scmp.ne.s32.totalorder %s266, %s280
      %p282 = scmp.eq.s32.totalorder %s41, 0
      %p283 = por %p281, %p282
      %s284 = ssub.s32 %s42, %s54
      %p285 = scmp.eq.s32.totalorder %s284, 0
      %s287 = sadd.s32 %s286, 1
      %s288 = scalar_select %p285, %s286, %s287
      %p291 = pneg %p285
      %p292 = scmp.eq.s32.totalorder %s35, 1
      %p293 = por %p291, %p292
      %p294 = scmp.ne.s32.totalorder %s286, %s289
      %p295 = scmp.eq.s32.totalorder %s35, 0
      %p296 = por %p294, %p295
      %p297 = scmp.ne.s32.totalorder %s286, %s289
      %p298 = scmp.eq.s32.totalorder %s40, 1
      %p299 = por %p297, %p298
      %p300 = scmp.ne.s32.totalorder %s289, %s290
      %p301 = scmp.eq.s32.totalorder %s40, 0
      %p302 = por %p300, %p301
      %p303 = scmp.ne.s32.totalorder %s289, %s290
      %p304 = scmp.eq.s32.totalorder %s41, 1
      %p305 = por %p303, %p304
      %p307 = scmp.ne.s32.totalorder %s290, %s306
      %p308 = scmp.eq.s32.totalorder %s41, 0
      %p309 = por %p307, %p308
      %s310 = ssub.s32 %s43, %s50
      %s311 = ssub.s32 %s42, %s54
      %s312 = sor.u32 %s310, %s311
      %p313 = scmp.eq.s32.totalorder %s312, 0
      %s315 = sadd.s32 %s314, 1
      %s316 = scalar_select %p313, %s314, %s315
      %p319 = pneg %p313
      %p320 = scmp.eq.s32.totalorder %s35, 1
      %p321 = por %p319, %p320
      %p322 = scmp.ne.s32.totalorder %s314, %s317
      %p323 = scmp.eq.s32.totalorder %s35, 0
      %p324 = por %p322, %p323
      %p325 = scmp.ne.s32.totalorder %s314, %s317
      %p326 = scmp.eq.s32.totalorder %s40, 1
      %p327 = por %p325, %p326
      %p328 = scmp.ne.s32.totalorder %s317, %s318
      %p329 = scmp.eq.s32.totalorder %s40, 0
      %p330 = por %p328, %p329
      %p331 = scmp.ne.s32.totalorder %s317, %s318
      %p332 = scmp.eq.s32.totalorder %s41, 1
      %p333 = por %p331, %p332
      %p335 = scmp.ne.s32.totalorder %s318, %s334
      %p336 = scmp.eq.s32.totalorder %s41, 0
      %p337 = por %p335, %p336
      %s338 = ssub.s32 %s43, %s50
      %s339 = ssub.s32 %s42, %s54
      %s340 = sor.u32 %s338, %s339
      %p341 = scmp.eq.s32.totalorder %s340, 0
      %s343 = sadd.s32 %s342, 1
      %s344 = scalar_select %p341, %s342, %s343
      %p347 = pneg %p341
      %p348 = scmp.eq.s32.totalorder %s35, 1
      %p349 = por %p347, %p348
      %p350 = scmp.ne.s32.totalorder %s342, %s345
      %p351 = scmp.eq.s32.totalorder %s35, 0
      %p352 = por %p350, %p351
      %p353 = scmp.ne.s32.totalorder %s342, %s345
      %p354 = scmp.eq.s32.totalorder %s40, 1
      %p355 = por %p353, %p354
      %p356 = scmp.ne.s32.totalorder %s345, %s346
      %p357 = scmp.eq.s32.totalorder %s40, 0
      %p358 = por %p356, %p357
      %p359 = scmp.ne.s32.totalorder %s345, %s346
      %p360 = scmp.eq.s32.totalorder %s41, 1
      %p361 = por %p359, %p360
      %p363 = scmp.ne.s32.totalorder %s346, %s362
      %p364 = scmp.eq.s32.totalorder %s41, 0
      %p365 = por %p363, %p364
      %p366 = scmp.le.s32.totalorder 1, %s35
      %p367 = scmp.lt.s32.totalorder %s35, 3
      %p368 = pnand %p366, %p367
      %p369 = pneg %p368
      // Predicated region
      $region9: #{osme_mamc_forward.1} parent=5 // pred_check
        _
      $region10: #{osme_mamc_forward.1} parent=5 // pred_check_branch
        %371 = sbr.rel (%p368) target = $region12
      $region11: #{osme_mamc_forward.1} parent=5 // pred_region
        %s372 = ssub.s32 %s35, 1
        // Predicated region
        $region13: #{osme_mamc_forward.1} parent=11 // pred_check
          %p373 = pneg %p73
        $region14: #{osme_mamc_forward.1} parent=11 // pred_check_branch
          %375 = sbr.rel (%p373) target = $region16
        $region15: #{osme_mamc_forward.1} parent=11 // pred_region
          %s376 = smul.u32 2, %s44
          %s378 = ssub.s32 8192, 8192
          %379 = vsyncadd [#allocation3], %s378
          %s380 = smul.addr %s376, 32
          %s381 = smul.addr %s380, 128
          %s382 = scalar_lea.hbm %s0, %s381
          %s383 = sshll.u32 [#allocation2], 4
          %s384 = int_to_ptr.vmem [resolvable:$true] %s383
          %389 = dma.hbm_to_vmem [thread:$0]  %s382, 8192, %s384, [#allocation3], 128, 128, 8
        $region16: #{osme_mamc_forward.1} parent=11 // pred_fallthru
          _
        // Predicated region
        $region17: #{osme_mamc_forward.1} parent=11 // pred_check
          %p390 = pneg %p276
        $region18: #{osme_mamc_forward.1} parent=11 // pred_check_branch
          %392 = sbr.rel (%p390) target = $region20
        $region19: #{osme_mamc_forward.1} parent=11 // pred_region
          %s394 = ssub.s32 16, 16
          %395 = vsyncadd [#allocation15], %s394
          %s397 = sshll.u32 [#allocation16], 4
          %s398 = int_to_ptr.vmem [resolvable:$true] %s397
          %400 = dma.hbm_to_vmem [thread:$0]  %s8, 16, %s398, [#allocation15]
        $region20: #{osme_mamc_forward.1} parent=11 // pred_fallthru
          _
      $region12: #{osme_mamc_forward.1} parent=5 // pred_fallthru
        _
      %p401 = scmp.lt.s32.totalorder %s35, 2
      // Predicated region
      $region21: #{osme_mamc_forward.1} parent=5 // pred_check
        %p402 = pneg %p401
      $region22: #{osme_mamc_forward.1} parent=5 // pred_check_branch
        %404 = sbr.rel (%p402) target = $region24
      $region23: #{osme_mamc_forward.1} parent=5 // pred_region
        // Predicated region
        $region25: #{osme_mamc_forward.1} parent=23 // pred_check
          %p405 = pneg %p93
        $region26: #{osme_mamc_forward.1} parent=23 // pred_check_branch
          %407 = sbr.rel (%p405) target = $region28
        $region27: #{osme_mamc_forward.1} parent=23 // pred_region
          %s408 = sand.u32 %s35, 1
          %s409 = scalar_lea.sflag [#allocation6], %s408
          %s410 = sand.u32 %s83, 1
          %s411 = smul.addr %s410, 4
          %s412 = scalar_lea.vmem [#allocation5], %s411
          %s414 = ssub.s32 64, 64
          %415 = vsyncadd %s409, %s414
          %s416 = smul.addr %s43, 64
          %s417 = scalar_lea.hbm %s1, %s416
          %s419 = sshll.u32 %s412, 4
          %s420 = int_to_ptr.vmem [resolvable:$true] %s419
          %422 = dma.hbm_to_vmem [thread:$0]  %s417, 64, %s420, %s409
        $region28: #{osme_mamc_forward.1} parent=23 // pred_fallthru
          _
        // Predicated region
        $region29: #{osme_mamc_forward.1} parent=23 // pred_check
          %p423 = pneg %p119
        $region30: #{osme_mamc_forward.1} parent=23 // pred_check_branch
          %425 = sbr.rel (%p423) target = $region32
        $region31: #{osme_mamc_forward.1} parent=23 // pred_region
          %s426 = sand.u32 %s35, 1
          %s427 = scalar_lea.sflag [#allocation6], %s426
          %s428 = sand.u32 %s109, 1
          %s429 = scalar_lea.vmem [#allocation7], %s428
          %s431 = ssub.s32 16, 16
          %432 = vsyncadd %s427, %s431
          %s433 = smul.addr %s43, 16
          %s434 = scalar_lea.hbm %s2, %s433
          %s436 = sshll.u32 %s429, 4
          %s437 = int_to_ptr.vmem [resolvable:$true] %s436
          %439 = dma.hbm_to_vmem [thread:$0]  %s434, 16, %s437, %s427
        $region32: #{osme_mamc_forward.1} parent=23 // pred_fallthru
          _
        // Predicated region
        $region33: #{osme_mamc_forward.1} parent=23 // pred_check
          %p440 = pneg %p145
        $region34: #{osme_mamc_forward.1} parent=23 // pred_check_branch
          %442 = sbr.rel (%p440) target = $region36
        $region35: #{osme_mamc_forward.1} parent=23 // pred_region
          %s443 = sand.u32 %s35, 1
          %s444 = scalar_lea.sflag [#allocation9], %s443
          %s445 = sand.u32 %s135, 1
          %s446 = scalar_lea.vmem [#allocation8], %s445
          %s448 = ssub.s32 16, 16
          %449 = vsyncadd %s444, %s448
          %s450 = smul.addr %s43, 16
          %s451 = scalar_lea.hbm %s3, %s450
          %s453 = sshll.u32 %s446, 4
          %s454 = int_to_ptr.vmem [resolvable:$true] %s453
          %456 = dma.hbm_to_vmem [thread:$0]  %s451, 16, %s454, %s444
        $region36: #{osme_mamc_forward.1} parent=23 // pred_fallthru
          _
        // Predicated region
        $region37: #{osme_mamc_forward.1} parent=23 // pred_check
          %p457 = pneg %p171
        $region38: #{osme_mamc_forward.1} parent=23 // pred_check_branch
          %459 = sbr.rel (%p457) target = $region40
        $region39: #{osme_mamc_forward.1} parent=23 // pred_region
          %s460 = sand.u32 %s35, 1
          %s461 = scalar_lea.sflag [#allocation9], %s460
          %s462 = sand.u32 %s161, 1
          %s463 = scalar_lea.vmem [#allocation10], %s462
          %s465 = ssub.s32 16, 16
          %466 = vsyncadd %s461, %s465
          %s467 = smul.addr %s43, 16
          %s468 = scalar_lea.hbm %s4, %s467
          %s470 = sshll.u32 %s463, 4
          %s471 = int_to_ptr.vmem [resolvable:$true] %s470
          %473 = dma.hbm_to_vmem [thread:$0]  %s468, 16, %s471, %s461
        $region40: #{osme_mamc_forward.1} parent=23 // pred_fallthru
          _
        // Predicated region
        $region41: #{osme_mamc_forward.1} parent=23 // pred_check
          %p474 = pneg %p197
        $region42: #{osme_mamc_forward.1} parent=23 // pred_check_branch
          %476 = sbr.rel (%p474) target = $region44
        $region43: #{osme_mamc_forward.1} parent=23 // pred_region
          %s477 = sand.u32 %s35, 1
          %s478 = scalar_lea.sflag [#allocation12], %s477
          %s479 = sand.u32 %s187, 1
          %s480 = smul.addr %s479, 16
          %s481 = scalar_lea.vmem [#allocation11], %s480
          %s483 = ssub.s32 256, 256
          %484 = vsyncadd %s478, %s483
          %s485 = smul.addr %s43, 4
          %s486 = smul.addr %s485, 64
          %s487 = scalar_lea.hbm %s5, %s486
          %s489 = sshll.u32 %s481, 4
          %s490 = int_to_ptr.vmem [resolvable:$true] %s489
          %492 = dma.hbm_to_vmem [thread:$0]  %s487, 256, %s490, %s478
        $region44: #{osme_mamc_forward.1} parent=23 // pred_fallthru
          _
        // Predicated region
        $region45: #{osme_mamc_forward.1} parent=23 // pred_check
          %p493 = pneg %p223
        $region46: #{osme_mamc_forward.1} parent=23 // pred_check_branch
          %495 = sbr.rel (%p493) target = $region48
        $region47: #{osme_mamc_forward.1} parent=23 // pred_region
          %s496 = sand.u32 %s35, 1
          %s497 = scalar_lea.sflag [#allocation12], %s496
          %s498 = sand.u32 %s213, 1
          %s499 = smul.addr %s498, 4
          %s500 = scalar_lea.vmem [#allocation13], %s499
          %s502 = ssub.s32 64, 64
          %503 = vsyncadd %s497, %s502
          %s504 = smul.addr %s43, 4
          %s505 = smul.addr %s504, 16
          %s506 = scalar_lea.hbm %s6, %s505
          %s508 = sshll.u32 %s500, 4
          %s509 = int_to_ptr.vmem [resolvable:$true] %s508
          %511 = dma.hbm_to_vmem [thread:$0]  %s506, 64, %s509, %s497
        $region48: #{osme_mamc_forward.1} parent=23 // pred_fallthru
          _
        // Predicated region
        $region49: #{osme_mamc_forward.1} parent=23 // pred_check
          %p512 = pneg %p249
        $region50: #{osme_mamc_forward.1} parent=23 // pred_check_branch
          %514 = sbr.rel (%p512) target = $region52
        $region51: #{osme_mamc_forward.1} parent=23 // pred_region
          %s515 = sand.u32 %s35, 1
          %s516 = scalar_lea.sflag [#allocation15], %s515
          %s517 = sand.u32 %s239, 1
          %s518 = smul.addr %s517, 512
          %s519 = scalar_lea.vmem [#allocation14], %s518
          %s521 = ssub.s32 8192, 8192
          %522 = vsyncadd %s516, %s521
          %s523 = smul.addr %s43, 64
          %s524 = smul.addr %s523, 128
          %s525 = scalar_lea.hbm %s7, %s524
          %s526 = sshll.u32 %s519, 4
          %s527 = int_to_ptr.vmem [resolvable:$true] %s526
          %532 = dma.hbm_to_vmem [thread:$0]  %s525, 8192, %s527, %s516, 128, 128, 8
        $region52: #{osme_mamc_forward.1} parent=23 // pred_fallthru
          _
      $region24: #{osme_mamc_forward.1} parent=5 // pred_fallthru
        _
      %p533 = scmp.le.s32.totalorder 1, %s35
      %p534 = scmp.lt.s32.totalorder %s35, 3
      %p535 = pnand %p533, %p534
      %p536 = pneg %p535
      // Predicated region
      $region53: #{osme_mamc_forward.1} parent=5 // pred_check
        _
      $region54: #{osme_mamc_forward.1} parent=5 // pred_check_branch
        %538 = sbr.rel (%p535) target = $region56
      $region55: #{osme_mamc_forward.1} parent=5 // pred_region
        %s539 = ssub.s32 %s35, 1
        // Predicated region
        $region57: #{osme_mamc_forward.1} parent=55 // pred_check
          %p540 = pneg %p73
        $region58: #{osme_mamc_forward.1} parent=55 // pred_check_branch
          %542 = sbr.rel (%p540) target = $region60
        $region59: #{osme_mamc_forward.1} parent=55 // pred_region
          %543 = dma.done [#allocation3], 8192
        $region60: #{osme_mamc_forward.1} parent=55 // pred_fallthru
          _
        %s544 = sand.u32 %s40, 1
        %s545 = scalar_lea.sflag [#allocation6], %s544
        %s546 = sand.u32 %s86, 1
        %s547 = smul.addr %s546, 4
        %s548 = scalar_lea.vmem [#allocation5], %s547
        // Predicated region
        $region61: #{osme_mamc_forward.1} parent=55 // pred_check
          %p549 = pneg %p99
        $region62: #{osme_mamc_forward.1} parent=55 // pred_check_branch
          %551 = sbr.rel (%p549) target = $region64
        $region63: #{osme_mamc_forward.1} parent=55 // pred_region
          %552 = dma.done %s545, 64
        $region64: #{osme_mamc_forward.1} parent=55 // pred_fallthru
          _
        %s553 = sand.u32 %s40, 1
        %s554 = scalar_lea.sflag [#allocation6], %s553
        %s555 = sand.u32 %s112, 1
        %s556 = scalar_lea.vmem [#allocation7], %s555
        // Predicated region
        $region65: #{osme_mamc_forward.1} parent=55 // pred_check
          %p557 = pneg %p125
        $region66: #{osme_mamc_forward.1} parent=55 // pred_check_branch
          %559 = sbr.rel (%p557) target = $region68
        $region67: #{osme_mamc_forward.1} parent=55 // pred_region
          %560 = dma.done %s554, 16
        $region68: #{osme_mamc_forward.1} parent=55 // pred_fallthru
          _
        %s561 = sand.u32 %s40, 1
        %s562 = scalar_lea.sflag [#allocation9], %s561
        %s563 = sand.u32 %s138, 1
        %s564 = scalar_lea.vmem [#allocation8], %s563
        // Predicated region
        $region69: #{osme_mamc_forward.1} parent=55 // pred_check
          %p565 = pneg %p151
        $region70: #{osme_mamc_forward.1} parent=55 // pred_check_branch
          %567 = sbr.rel (%p565) target = $region72
        $region71: #{osme_mamc_forward.1} parent=55 // pred_region
          %568 = dma.done %s562, 16
        $region72: #{osme_mamc_forward.1} parent=55 // pred_fallthru
          _
        %s569 = sand.u32 %s40, 1
        %s570 = scalar_lea.sflag [#allocation9], %s569
        %s571 = sand.u32 %s164, 1
        %s572 = scalar_lea.vmem [#allocation10], %s571
        // Predicated region
        $region73: #{osme_mamc_forward.1} parent=55 // pred_check
          %p573 = pneg %p177
        $region74: #{osme_mamc_forward.1} parent=55 // pred_check_branch
          %575 = sbr.rel (%p573) target = $region76
        $region75: #{osme_mamc_forward.1} parent=55 // pred_region
          %576 = dma.done %s570, 16
        $region76: #{osme_mamc_forward.1} parent=55 // pred_fallthru
          _
        %s577 = sand.u32 %s40, 1
        %s578 = scalar_lea.sflag [#allocation12], %s577
        %s579 = sand.u32 %s190, 1
        %s580 = smul.addr %s579, 16
        %s581 = scalar_lea.vmem [#allocation11], %s580
        // Predicated region
        $region77: #{osme_mamc_forward.1} parent=55 // pred_check
          %p582 = pneg %p203
        $region78: #{osme_mamc_forward.1} parent=55 // pred_check_branch
          %584 = sbr.rel (%p582) target = $region80
        $region79: #{osme_mamc_forward.1} parent=55 // pred_region
          %585 = dma.done %s578, 256
        $region80: #{osme_mamc_forward.1} parent=55 // pred_fallthru
          _
        %s586 = sand.u32 %s40, 1
        %s587 = scalar_lea.sflag [#allocation12], %s586
        %s588 = sand.u32 %s216, 1
        %s589 = smul.addr %s588, 4
        %s590 = scalar_lea.vmem [#allocation13], %s589
        // Predicated region
        $region81: #{osme_mamc_forward.1} parent=55 // pred_check
          %p591 = pneg %p229
        $region82: #{osme_mamc_forward.1} parent=55 // pred_check_branch
          %593 = sbr.rel (%p591) target = $region84
        $region83: #{osme_mamc_forward.1} parent=55 // pred_region
          %594 = dma.done %s587, 64
        $region84: #{osme_mamc_forward.1} parent=55 // pred_fallthru
          _
        %s595 = sand.u32 %s40, 1
        %s596 = scalar_lea.sflag [#allocation15], %s595
        %s597 = sand.u32 %s242, 1
        %s598 = smul.addr %s597, 512
        %s599 = scalar_lea.vmem [#allocation14], %s598
        // Predicated region
        $region85: #{osme_mamc_forward.1} parent=55 // pred_check
          %p600 = pneg %p255
        $region86: #{osme_mamc_forward.1} parent=55 // pred_check_branch
          %602 = sbr.rel (%p600) target = $region88
        $region87: #{osme_mamc_forward.1} parent=55 // pred_region
          %603 = dma.done %s596, 8192
        $region88: #{osme_mamc_forward.1} parent=55 // pred_fallthru
          _
        // Predicated region
        $region89: #{osme_mamc_forward.1} parent=55 // pred_check
          %p604 = pneg %p276
        $region90: #{osme_mamc_forward.1} parent=55 // pred_check_branch
          %606 = sbr.rel (%p604) target = $region92
        $region91: #{osme_mamc_forward.1} parent=55 // pred_region
          %607 = dma.done [#allocation15], 16
        $region92: #{osme_mamc_forward.1} parent=55 // pred_fallthru
          _
        %p608 = pneg %p73
        %p609 = pneg %p70
        %s610 = sand.u32 %s40, 1
        %s611 = scalar_lea.sflag [#allocation6], %s610
        %s612 = sand.u32 %s86, 1
        %s613 = smul.addr %s612, 4
        %s614 = scalar_lea.vmem [#allocation5], %s613
        %p615 = pneg %p99
        %p616 = pneg %p96
        %s617 = sand.u32 %s40, 1
        %s618 = scalar_lea.sflag [#allocation6], %s617
        %s619 = sand.u32 %s112, 1
        %s620 = scalar_lea.vmem [#allocation7], %s619
        %p621 = pneg %p125
        %p622 = pneg %p122
        %s623 = sand.u32 %s40, 1
        %s624 = scalar_lea.sflag [#allocation9], %s623
        %s625 = sand.u32 %s138, 1
        %s626 = scalar_lea.vmem [#allocation8], %s625
        %p627 = pneg %p151
        %p628 = pneg %p148
        %s629 = sand.u32 %s40, 1
        %s630 = scalar_lea.sflag [#allocation9], %s629
        %s631 = sand.u32 %s164, 1
        %s632 = scalar_lea.vmem [#allocation10], %s631
        %p633 = pneg %p177
        %p634 = pneg %p174
        %s635 = sand.u32 %s40, 1
        %s636 = scalar_lea.sflag [#allocation12], %s635
        %s637 = sand.u32 %s190, 1
        %s638 = smul.addr %s637, 16
        %s639 = scalar_lea.vmem [#allocation11], %s638
        %p640 = pneg %p203
        %p641 = pneg %p200
        %s642 = sand.u32 %s40, 1
        %s643 = scalar_lea.sflag [#allocation12], %s642
        %s644 = sand.u32 %s216, 1
        %s645 = smul.addr %s644, 4
        %s646 = scalar_lea.vmem [#allocation13], %s645
        %p647 = pneg %p229
        %p648 = pneg %p226
        %s649 = sand.u32 %s40, 1
        %s650 = scalar_lea.sflag [#allocation15], %s649
        %s651 = sand.u32 %s242, 1
        %s652 = smul.addr %s651, 512
        %s653 = scalar_lea.vmem [#allocation14], %s652
        %p654 = pneg %p255
        %p655 = pneg %p252
        %p656 = pneg %p276
        %p657 = pneg %p273
        %p658 = pneg %p302
        %p659 = pneg %p299
        %p660 = pneg %p330
        %p661 = pneg %p327
        %s662 = sand.u32 %s40, 1
        %s663 = scalar_lea.sflag [#allocation19], %s662
        %s664 = sand.u32 %s317, 1
        %s665 = smul.addr %s664, 8
        %s666 = scalar_lea.vmem [#allocation18], %s665
        %p667 = pneg %p358
        %p668 = pneg %p355
        %s669 = sand.u32 %s40, 1
        %s670 = scalar_lea.sflag [#allocation19], %s669
        %s671 = sand.u32 %s345, 1
        %s672 = smul.addr %s671, 4
        %s673 = scalar_lea.vmem [#allocation20], %s672
        %s674 = smul.u32 2, %s44
        %s675 = smul.u32 2, %s44
        %s676 = smul.u32 2, %s44
        %s677 = smul.u32 2, %s44
        %v678 = vld [vmem:[#allocation2] sm:$0xff]
        %v679 = vld [vmem:[#allocation2 + $0x8] sm:$0xff]
        %v680 = vld [vmem:[#allocation2 + $0x10] sm:$0xff]
        %v681 = vld [vmem:[#allocation2 + $0x18] sm:$0xff]
        %v682 = vld [vmem:[#allocation2 + $0x20] sm:$0xff]
        %v683 = vld [vmem:[#allocation2 + $0x28] sm:$0xff]
        %v684 = vld [vmem:[#allocation2 + $0x30] sm:$0xff]
        %v685 = vld [vmem:[#allocation2 + $0x38] sm:$0xff]
        %v686 = vld [vmem:[#allocation2 + $0x40] sm:$0xff]
        %v687 = vld [vmem:[#allocation2 + $0x48] sm:$0xff]
        %v688 = vld [vmem:[#allocation2 + $0x50] sm:$0xff]
        %v689 = vld [vmem:[#allocation2 + $0x58] sm:$0xff]
        %v690 = vld [vmem:[#allocation2 + $0x60] sm:$0xff]
        %v691 = vld [vmem:[#allocation2 + $0x68] sm:$0xff]
        %v692 = vld [vmem:[#allocation2 + $0x70] sm:$0xff]
        %v693 = vld [vmem:[#allocation2 + $0x78] sm:$0xff]
        %v694 = vld [vmem:[#allocation2 + $0x80] sm:$0xff]
        %v695 = vld [vmem:[#allocation2 + $0x88] sm:$0xff]
        %v696 = vld [vmem:[#allocation2 + $0x90] sm:$0xff]
        %v697 = vld [vmem:[#allocation2 + $0x98] sm:$0xff]
        %v698 = vld [vmem:[#allocation2 + $0xa0] sm:$0xff]
        %v699 = vld [vmem:[#allocation2 + $0xa8] sm:$0xff]
        %v700 = vld [vmem:[#allocation2 + $0xb0] sm:$0xff]
        %v701 = vld [vmem:[#allocation2 + $0xb8] sm:$0xff]
        %v702 = vld [vmem:[#allocation2 + $0xc0] sm:$0xff]
        %v703 = vld [vmem:[#allocation2 + $0xc8] sm:$0xff]
        %v704 = vld [vmem:[#allocation2 + $0xd0] sm:$0xff]
        %v705 = vld [vmem:[#allocation2 + $0xd8] sm:$0xff]
        %v706 = vld [vmem:[#allocation2 + $0xe0] sm:$0xff]
        %v707 = vld [vmem:[#allocation2 + $0xe8] sm:$0xff]
        %v708 = vld [vmem:[#allocation2 + $0xf0] sm:$0xff]
        %v709 = vld [vmem:[#allocation2 + $0xf8] sm:$0xff]
        %v710 = vld [vmem:[#allocation2 + $0x100] sm:$0xff]
        %v711 = vld [vmem:[#allocation2 + $0x108] sm:$0xff]
        %v712 = vld [vmem:[#allocation2 + $0x110] sm:$0xff]
        %v713 = vld [vmem:[#allocation2 + $0x118] sm:$0xff]
        %v714 = vld [vmem:[#allocation2 + $0x120] sm:$0xff]
        %v715 = vld [vmem:[#allocation2 + $0x128] sm:$0xff]
        %v716 = vld [vmem:[#allocation2 + $0x130] sm:$0xff]
        %v717 = vld [vmem:[#allocation2 + $0x138] sm:$0xff]
        %v718 = vld [vmem:[#allocation2 + $0x140] sm:$0xff]
        %v719 = vld [vmem:[#allocation2 + $0x148] sm:$0xff]
        %v720 = vld [vmem:[#allocation2 + $0x150] sm:$0xff]
        %v721 = vld [vmem:[#allocation2 + $0x158] sm:$0xff]
        %v722 = vld [vmem:[#allocation2 + $0x160] sm:$0xff]
        %v723 = vld [vmem:[#allocation2 + $0x168] sm:$0xff]
        %v724 = vld [vmem:[#allocation2 + $0x170] sm:$0xff]
        %v725 = vld [vmem:[#allocation2 + $0x178] sm:$0xff]
        %v726 = vld [vmem:[#allocation2 + $0x180] sm:$0xff]
        %v727 = vld [vmem:[#allocation2 + $0x188] sm:$0xff]
        %v728 = vld [vmem:[#allocation2 + $0x190] sm:$0xff]
        %v729 = vld [vmem:[#allocation2 + $0x198] sm:$0xff]
        %v730 = vld [vmem:[#allocation2 + $0x1a0] sm:$0xff]
        %v731 = vld [vmem:[#allocation2 + $0x1a8] sm:$0xff]
        %v732 = vld [vmem:[#allocation2 + $0x1b0] sm:$0xff]
        %v733 = vld [vmem:[#allocation2 + $0x1b8] sm:$0xff]
        %v734 = vld [vmem:[#allocation2 + $0x1c0] sm:$0xff]
        %v735 = vld [vmem:[#allocation2 + $0x1c8] sm:$0xff]
        %v736 = vld [vmem:[#allocation2 + $0x1d0] sm:$0xff]
        %v737 = vld [vmem:[#allocation2 + $0x1d8] sm:$0xff]
        %v738 = vld [vmem:[#allocation2 + $0x1e0] sm:$0xff]
        %v739 = vld [vmem:[#allocation2 + $0x1e8] sm:$0xff]
        %v740 = vld [vmem:[#allocation2 + $0x1f0] sm:$0xff]
        %v741 = vld [vmem:[#allocation2 + $0x1f8] sm:$0xff]
        %v742 = vld [vmem:[%s548] sm:$0xf]
        %v743 = vld [vmem:[%s556] sm:$0x1]
        %v745 = vlaneseq
        %v746 = vshrl.u32 %v745, 7
        %v747 = vsub.s32 0, %v746
        %v748 = vrot.slane %v743, %v747
        %vm750 = vcmask 31744
        %v752 = vsel %vm750, %v678, 0
        %v755 = vsel %vm750, %v679, 0
        %v758 = vsel %vm750, %v680, 0
        %v761 = vsel %vm750, %v681, 0
        %v764 = vsel %vm750, %v682, 0
        %v767 = vsel %vm750, %v683, 0
        %v770 = vsel %vm750, %v684, 0
        %v773 = vsel %vm750, %v685, 0
        %v776 = vsel %vm750, %v686, 0
        %v779 = vsel %vm750, %v687, 0
        %v782 = vsel %vm750, %v688, 0
        %v785 = vsel %vm750, %v689, 0
        %v788 = vsel %vm750, %v690, 0
        %v791 = vsel %vm750, %v691, 0
        %v794 = vsel %vm750, %v692, 0
        %v797 = vsel %vm750, %v693, 0
        %v800 = vsel %vm750, %v694, 0
        %v803 = vsel %vm750, %v695, 0
        %v806 = vsel %vm750, %v696, 0
        %v809 = vsel %vm750, %v697, 0
        %v812 = vsel %vm750, %v698, 0
        %v815 = vsel %vm750, %v699, 0
        %v818 = vsel %vm750, %v700, 0
        %v821 = vsel %vm750, %v701, 0
        %v824 = vsel %vm750, %v702, 0
        %v827 = vsel %vm750, %v703, 0
        %v830 = vsel %vm750, %v704, 0
        %v833 = vsel %vm750, %v705, 0
        %v836 = vsel %vm750, %v706, 0
        %v839 = vsel %vm750, %v707, 0
        %v842 = vsel %vm750, %v708, 0
        %v845 = vsel %vm750, %v709, 0
        %v848 = vsel %vm750, %v710, 0
        %v851 = vsel %vm750, %v711, 0
        %v854 = vsel %vm750, %v712, 0
        %v857 = vsel %vm750, %v713, 0
        %v860 = vsel %vm750, %v714, 0
        %v863 = vsel %vm750, %v715, 0
        %v866 = vsel %vm750, %v716, 0
        %v869 = vsel %vm750, %v717, 0
        %v872 = vsel %vm750, %v718, 0
        %v875 = vsel %vm750, %v719, 0
        %v878 = vsel %vm750, %v720, 0
        %v881 = vsel %vm750, %v721, 0
        %v884 = vsel %vm750, %v722, 0
        %v887 = vsel %vm750, %v723, 0
        %v890 = vsel %vm750, %v724, 0
        %v893 = vsel %vm750, %v725, 0
        %v896 = vsel %vm750, %v726, 0
        %v899 = vsel %vm750, %v727, 0
        %v902 = vsel %vm750, %v728, 0
        %v905 = vsel %vm750, %v729, 0
        %v908 = vsel %vm750, %v730, 0
        %v911 = vsel %vm750, %v731, 0
        %v914 = vsel %vm750, %v732, 0
        %v917 = vsel %vm750, %v733, 0
        %v920 = vsel %vm750, %v734, 0
        %v923 = vsel %vm750, %v735, 0
        %v926 = vsel %vm750, %v736, 0
        %v929 = vsel %vm750, %v737, 0
        %v932 = vsel %vm750, %v738, 0
        %v935 = vsel %vm750, %v739, 0
        %v938 = vsel %vm750, %v740, 0
        %v941 = vsel %vm750, %v741, 0
        %vm943 = vcmask 1043456
        %v945 = vsel %vm943, %v742, 0
        %947 = vmatprep.subr.mxu0 0.0
        %948 = vmatpush1.msra.mxu0 %v945
        %949 = vmatprep.subr.mxu0 0.0
        %950 = vmatpush1.msra.mxu0 0.0
        %951 = vmatprep.subr.mxu0 0.0
        %952 = vmatpush1.msra.mxu0 0.0
        %953 = vmatprep.subr.mxu0 0.0
        %954 = vmatpush1.msra.mxu0 0.0
        %955 = vmatprep.subr.mxu0 0.0
        %956 = vmatpush1.msra.mxu0 0.0
        %957 = vmatprep.subr.mxu0 0.0
        %958 = vmatpush1.msra.mxu0 0.0
        %959 = vmatprep.subr.mxu0 0.0
        %960 = vmatpush1.msra.mxu0 0.0
        %961 = vmatprep.subr.mxu0 0.0
        %962 = vmatpush1.msra.mxu0 0.0
        %963 = vmatprep.subr.mxu0 0.0
        %964 = vmatpush1.msra.mxu0 0.0
        %965 = vmatprep.subr.mxu0 0.0
        %966 = vmatpush1.msra.mxu0 0.0
        %967 = vmatprep.subr.mxu0 0.0
        %968 = vmatpush1.msra.mxu0 0.0
        %969 = vmatprep.subr.mxu0 0.0
        %970 = vmatpush1.msra.mxu0 0.0
        %971 = vmatprep.subr.mxu0 0.0
        %972 = vmatpush1.msra.mxu0 0.0
        %973 = vmatprep.subr.mxu0 0.0
        %974 = vmatpush1.msra.mxu0 0.0
        %975 = vmatprep.subr.mxu0 0.0
        %976 = vmatpush1.msra.mxu0 0.0
        %977 = vmatprep.subr.mxu0 0.0
        %978 = vmatpush1.msra.mxu0 0.0
        %979 = vmatprep.subr.mxu0 0.0
        %980 = vmatpush1.msra.mxu0 0.0
        %981 = vmatprep.subr.mxu0 0.0
        %982 = vmatpush1.msra.mxu0 0.0
        %983 = vmatprep.subr.mxu0 0.0
        %984 = vmatpush1.msra.mxu0 0.0
        %985 = vmatprep.subr.mxu0 0.0
        %986 = vmatpush1.msra.mxu0 0.0
        %987 = vmatprep.subr.mxu0 0.0
        %988 = vmatpush1.msra.mxu0 0.0
        %989 = vmatprep.subr.mxu0 0.0
        %990 = vmatpush1.msra.mxu0 0.0
        %991 = vmatprep.subr.mxu0 0.0
        %992 = vmatpush1.msra.mxu0 0.0
        %993 = vmatprep.subr.mxu0 0.0
        %994 = vmatpush1.msra.mxu0 0.0
        %995 = vmatprep.subr.mxu0 0.0
        %996 = vmatpush1.msra.mxu0 0.0
        %997 = vmatprep.subr.mxu0 0.0
        %998 = vmatpush1.msra.mxu0 0.0
        %999 = vmatprep.subr.mxu0 0.0
        %1000 = vmatpush1.msra.mxu0 0.0
        %1001 = vmatprep.subr.mxu0 0.0
        %1002 = vmatpush1.msra.mxu0 0.0
        %1003 = vmatprep.subr.mxu0 0.0
        %1004 = vmatpush1.msra.mxu0 0.0
        %1005 = vmatprep.subr.mxu0 0.0
        %1006 = vmatpush1.msra.mxu0 0.0
        %1007 = vmatprep.subr.mxu0 0.0
        %1008 = vmatpush1.msra.mxu0 0.0
        %1009 = vmatprep.subr.mxu0 0.0
        %1010 = vmatpush1.msra.mxu0 0.0
        %1011 = vmatprep.mubr.f32.mxu0 0.0
        %1012 = vmatmul.mubr.f32.gmra.mrb[0].mxu0 %v752
        %v1013 = vpop.f32.mrb[0].mxu0
        %v1014 = vadd.f32 %v748, %v1013
        %v1015 = vpop.f32.mrb[0].mxu0
        %1016 = vmatprep.mubr.f32.mxu0 0.0
        %1017 = vmatmul.mubr.f32.gmra.mrb[0].mxu0 %v755
        %v1018 = vpop.f32.mrb[0].mxu0
        %v1019 = vadd.f32 %v748, %v1018
        %v1020 = vpop.f32.mrb[0].mxu0
        %1021 = vmatprep.mubr.f32.mxu0 0.0
        %1022 = vmatmul.mubr.f32.gmra.mrb[0].mxu0 %v758
        %v1023 = vpop.f32.mrb[0].mxu0
        %v1024 = vadd.f32 %v748, %v1023
        %v1025 = vpop.f32.mrb[0].mxu0
        %1026 = vmatprep.mubr.f32.mxu0 0.0
        %1027 = vmatmul.mubr.f32.gmra.mrb[0].mxu0 %v761
        %v1028 = vpop.f32.mrb[0].mxu0
        %v1029 = vadd.f32 %v748, %v1028
        %v1030 = vpop.f32.mrb[0].mxu0
        %1031 = vmatprep.mubr.f32.mxu0 0.0
        %1032 = vmatmul.mubr.f32.gmra.mrb[0].mxu0 %v764
        %v1033 = vpop.f32.mrb[0].mxu0
        %v1034 = vadd.f32 %v748, %v1033
        %v1035 = vpop.f32.mrb[0].mxu0
        %1036 = vmatprep.mubr.f32.mxu0 0.0
        %1037 = vmatmul.mubr.f32.gmra.mrb[0].mxu0 %v767
        %v1038 = vpop.f32.mrb[0].mxu0
        %v1039 = vadd.f32 %v748, %v1038
        %v1040 = vpop.f32.mrb[0].mxu0
        %1041 = vmatprep.mubr.f32.mxu0 0.0
        %1042 = vmatmul.mubr.f32.gmra.mrb[0].mxu0 %v770
        %v1043 = vpop.f32.mrb[0].mxu0
        %v1044 = vadd.f32 %v748, %v1043
        %v1045 = vpop.f32.mrb[0].mxu0
        %1046 = vmatprep.mubr.f32.mxu0 0.0
        %1047 = vmatmul.mubr.f32.gmra.mrb[0].mxu0 %v773
        %v1048 = vpop.f32.mrb[0].mxu0
        %v1049 = vadd.f32 %v748, %v1048
        %v1050 = vpop.f32.mrb[0].mxu0
        %1051 = vmatprep.mubr.f32.mxu0 0.0
        %1052 = vmatmul.mubr.f32.gmra.mrb[0].mxu0 %v776
        %v1053 = vpop.f32.mrb[0].mxu0
        %v1054 = vadd.f32 %v748, %v1053
        %v1055 = vpop.f32.mrb[0].mxu0
        %1056 = vmatprep.mubr.f32.mxu0 0.0
        %1057 = vmatmul.mubr.f32.gmra.mrb[0].mxu0 %v779
        %v1058 = vpop.f32.mrb[0].mxu0
        %v1059 = vadd.f32 %v748, %v1058
        %v1060 = vpop.f32.mrb[0].mxu0
        %1061 = vmatprep.mubr.f32.mxu0 0.0
        %1062 = vmatmul.mubr.f32.gmra.mrb[0].mxu0 %v782
        %v1063 = vpop.f32.mrb[0].mxu0
        %v1064 = vadd.f32 %v748, %v1063
        %v1065 = vpop.f32.mrb[0].mxu0
        %1066 = vmatprep.mubr.f32.mxu0 0.0
        %1067 = vmatmul.mubr.f32.gmra.mrb[0].mxu0 %v785
        %v1068 = vpop.f32.mrb[0].mxu0
        %v1069 = vadd.f32 %v748, %v1068
        %v1070 = vpop.f32.mrb[0].mxu0
        %1071 = vmatprep.mubr.f32.mxu0 0.0
        %1072 = vmatmul.mubr.f32.gmra.mrb[0].mxu0 %v788
        %v1073 = vpop.f32.mrb[0].mxu0
        %v1074 = vadd.f32 %v748, %v1073
        %v1075 = vpop.f32.mrb[0].mxu0
        %1076 = vmatprep.mubr.f32.mxu0 0.0
        %1077 = vmatmul.mubr.f32.gmra.mrb[0].mxu0 %v791
        %v1078 = vpop.f32.mrb[0].mxu0
        %v1079 = vadd.f32 %v748, %v1078
        %v1080 = vpop.f32.mrb[0].mxu0
        %1081 = vmatprep.mubr.f32.mxu0 0.0
        %1082 = vmatmul.mubr.f32.gmra.mrb[0].mxu0 %v794
        %v1083 = vpop.f32.mrb[0].mxu0
        %v1084 = vadd.f32 %v748, %v1083
        %v1085 = vpop.f32.mrb[0].mxu0
        %1086 = vmatprep.mubr.f32.mxu0 0.0
        %1087 = vmatmul.mubr.f32.gmra.mrb[0].mxu0 %v797
        %v1088 = vpop.f32.mrb[0].mxu0
        %v1089 = vadd.f32 %v748, %v1088
        %v1090 = vpop.f32.mrb[0].mxu0
        %1091 = vmatprep.mubr.f32.mxu0 0.0
        %1092 = vmatmul.mubr.f32.gmra.mrb[0].mxu0 %v800
        %v1093 = vpop.f32.mrb[0].mxu0
        %v1094 = vadd.f32 %v748, %v1093
        %v1095 = vpop.f32.mrb[0].mxu0
        %1096 = vmatprep.mubr.f32.mxu0 0.0
        %1097 = vmatmul.mubr.f32.gmra.mrb[0].mxu0 %v803
        %v1098 = vpop.f32.mrb[0].mxu0
        %v1099 = vadd.f32 %v748, %v1098
        %v1100 = vpop.f32.mrb[0].mxu0
        %1101 = vmatprep.mubr.f32.mxu0 0.0
        %1102 = vmatmul.mubr.f32.gmra.mrb[0].mxu0 %v806
        %v1103 = vpop.f32.mrb[0].mxu0
        %v1104 = vadd.f32 %v748, %v1103
        %v1105 = vpop.f32.mrb[0].mxu0
        %1106 = vmatprep.mubr.f32.mxu0 0.0
        %1107 = vmatmul.mubr.f32.gmra.mrb[0].mxu0 %v809
        %v1108 = vpop.f32.mrb[0].mxu0
        %v1109 = vadd.f32 %v748, %v1108
        %v1110 = vpop.f32.mrb[0].mxu0
        %1111 = vmatprep.mubr.f32.mxu0 0.0
        %1112 = vmatmul.mubr.f32.gmra.mrb[0].mxu0 %v812
        %v1113 = vpop.f32.mrb[0].mxu0
        %v1114 = vadd.f32 %v748, %v1113
        %v1115 = vpop.f32.mrb[0].mxu0
        %1116 = vmatprep.mubr.f32.mxu0 0.0
        %1117 = vmatmul.mubr.f32.gmra.mrb[0].mxu0 %v815
        %v1118 = vpop.f32.mrb[0].mxu0
        %v1119 = vadd.f32 %v748, %v1118
        %v1120 = vpop.f32.mrb[0].mxu0
        %1121 = vmatprep.mubr.f32.mxu0 0.0
        %1122 = vmatmul.mubr.f32.gmra.mrb[0].mxu0 %v818
        %v1123 = vpop.f32.mrb[0].mxu0
        %v1124 = vadd.f32 %v748, %v1123
        %v1125 = vpop.f32.mrb[0].mxu0
        %1126 = vmatprep.mubr.f32.mxu0 0.0
        %1127 = vmatmul.mubr.f32.gmra.mrb[0].mxu0 %v821
        %v1128 = vpop.f32.mrb[0].mxu0
        %v1129 = vadd.f32 %v748, %v1128
        %v1130 = vpop.f32.mrb[0].mxu0
        %1131 = vmatprep.mubr.f32.mxu0 0.0
        %1132 = vmatmul.mubr.f32.gmra.mrb[0].mxu0 %v824
        %v1133 = vpop.f32.mrb[0].mxu0
        %v1134 = vadd.f32 %v748, %v1133
        %v1135 = vpop.f32.mrb[0].mxu0
        %1136 = vmatprep.mubr.f32.mxu0 0.0
        %1137 = vmatmul.mubr.f32.gmra.mrb[0].mxu0 %v827
        %v1138 = vpop.f32.mrb[0].mxu0
        %v1139 = vadd.f32 %v748, %v1138
        %v1140 = vpop.f32.mrb[0].mxu0
        %1141 = vmatprep.mubr.f32.mxu0 0.0
        %1142 = vmatmul.mubr.f32.gmra.mrb[0].mxu0 %v830
        %v1143 = vpop.f32.mrb[0].mxu0
        %v1144 = vadd.f32 %v748, %v1143
        %v1145 = vpop.f32.mrb[0].mxu0
        %1146 = vmatprep.mubr.f32.mxu0 0.0
        %1147 = vmatmul.mubr.f32.gmra.mrb[0].mxu0 %v833
        %v1148 = vpop.f32.mrb[0].mxu0
        %v1149 = vadd.f32 %v748, %v1148
        %v1150 = vpop.f32.mrb[0].mxu0
        %1151 = vmatprep.mubr.f32.mxu0 0.0
        %1152 = vmatmul.mubr.f32.gmra.mrb[0].mxu0 %v836
        %v1153 = vpop.f32.mrb[0].mxu0
        %v1154 = vadd.f32 %v748, %v1153
        %v1155 = vpop.f32.mrb[0].mxu0
        %1156 = vmatprep.mubr.f32.mxu0 0.0
        %1157 = vmatmul.mubr.f32.gmra.mrb[0].mxu0 %v839
        %v1158 = vpop.f32.mrb[0].mxu0
        %v1159 = vadd.f32 %v748, %v1158
        %v1160 = vpop.f32.mrb[0].mxu0
        %1161 = vmatprep.mubr.f32.mxu0 0.0
        %1162 = vmatmul.mubr.f32.gmra.mrb[0].mxu0 %v842
        %v1163 = vpop.f32.mrb[0].mxu0
        %v1164 = vadd.f32 %v748, %v1163
        %v1165 = vpop.f32.mrb[0].mxu0
        %1166 = vmatprep.mubr.f32.mxu0 0.0
        %1167 = vmatmul.mubr.f32.gmra.mrb[0].mxu0 %v845
        %v1168 = vpop.f32.mrb[0].mxu0
        %v1169 = vadd.f32 %v748, %v1168
        %v1170 = vpop.f32.mrb[0].mxu0
        %1171 = vmatprep.mubr.f32.mxu0 0.0
        %1172 = vmatmul.mubr.f32.gmra.mrb[0].mxu0 %v848
        %v1173 = vpop.f32.mrb[0].mxu0
        %v1174 = vadd.f32 %v748, %v1173
        %v1175 = vpop.f32.mrb[0].mxu0
        %1176 = vmatprep.mubr.f32.mxu0 0.0
        %1177 = vmatmul.mubr.f32.gmra.mrb[0].mxu0 %v851
        %v1178 = vpop.f32.mrb[0].mxu0
        %v1179 = vadd.f32 %v748, %v1178
        %v1180 = vpop.f32.mrb[0].mxu0
        %1181 = vmatprep.mubr.f32.mxu0 0.0
        %1182 = vmatmul.mubr.f32.gmra.mrb[0].mxu0 %v854
        %v1183 = vpop.f32.mrb[0].mxu0
        %v1184 = vadd.f32 %v748, %v1183
        %v1185 = vpop.f32.mrb[0].mxu0
        %1186 = vmatprep.mubr.f32.mxu0 0.0
        %1187 = vmatmul.mubr.f32.gmra.mrb[0].mxu0 %v857
        %v1188 = vpop.f32.mrb[0].mxu0
        %v1189 = vadd.f32 %v748, %v1188
        %v1190 = vpop.f32.mrb[0].mxu0
        %1191 = vmatprep.mubr.f32.mxu0 0.0
        %1192 = vmatmul.mubr.f32.gmra.mrb[0].mxu0 %v860
        %v1193 = vpop.f32.mrb[0].mxu0
        %v1194 = vadd.f32 %v748, %v1193
        %v1195 = vpop.f32.mrb[0].mxu0
        %1196 = vmatprep.mubr.f32.mxu0 0.0
        %1197 = vmatmul.mubr.f32.gmra.mrb[0].mxu0 %v863
        %v1198 = vpop.f32.mrb[0].mxu0
        %v1199 = vadd.f32 %v748, %v1198
        %v1200 = vpop.f32.mrb[0].mxu0
        %1201 = vmatprep.mubr.f32.mxu0 0.0
        %1202 = vmatmul.mubr.f32.gmra.mrb[0].mxu0 %v866
        %v1203 = vpop.f32.mrb[0].mxu0
        %v1204 = vadd.f32 %v748, %v1203
        %v1205 = vpop.f32.mrb[0].mxu0
        %1206 = vmatprep.mubr.f32.mxu0 0.0
        %1207 = vmatmul.mubr.f32.gmra.mrb[0].mxu0 %v869
        %v1208 = vpop.f32.mrb[0].mxu0
        %v1209 = vadd.f32 %v748, %v1208
        %v1210 = vpop.f32.mrb[0].mxu0
        %1211 = vmatprep.mubr.f32.mxu0 0.0
        %1212 = vmatmul.mubr.f32.gmra.mrb[0].mxu0 %v872
        %v1213 = vpop.f32.mrb[0].mxu0
        %v1214 = vadd.f32 %v748, %v1213
        %v1215 = vpop.f32.mrb[0].mxu0
        %1216 = vmatprep.mubr.f32.mxu0 0.0
        %1217 = vmatmul.mubr.f32.gmra.mrb[0].mxu0 %v875
        %v1218 = vpop.f32.mrb[0].mxu0
        %v1219 = vadd.f32 %v748, %v1218
        %v1220 = vpop.f32.mrb[0].mxu0
        %1221 = vmatprep.mubr.f32.mxu0 0.0
        %1222 = vmatmul.mubr.f32.gmra.mrb[0].mxu0 %v878
        %v1223 = vpop.f32.mrb[0].mxu0
        %v1224 = vadd.f32 %v748, %v1223
        %v1225 = vpop.f32.mrb[0].mxu0
        %1226 = vmatprep.mubr.f32.mxu0 0.0
        %1227 = vmatmul.mubr.f32.gmra.mrb[0].mxu0 %v881
        %v1228 = vpop.f32.mrb[0].mxu0
        %v1229 = vadd.f32 %v748, %v1228
        %v1230 = vpop.f32.mrb[0].mxu0
        %1231 = vmatprep.mubr.f32.mxu0 0.0
        %1232 = vmatmul.mubr.f32.gmra.mrb[0].mxu0 %v884
        %v1233 = vpop.f32.mrb[0].mxu0
        %v1234 = vadd.f32 %v748, %v1233
        %v1235 = vpop.f32.mrb[0].mxu0
        %1236 = vmatprep.mubr.f32.mxu0 0.0
        %1237 = vmatmul.mubr.f32.gmra.mrb[0].mxu0 %v887
        %v1238 = vpop.f32.mrb[0].mxu0
        %v1239 = vadd.f32 %v748, %v1238
        %v1240 = vpop.f32.mrb[0].mxu0
        %1241 = vmatprep.mubr.f32.mxu0 0.0
        %1242 = vmatmul.mubr.f32.gmra.mrb[0].mxu0 %v890
        %v1243 = vpop.f32.mrb[0].mxu0
        %v1244 = vadd.f32 %v748, %v1243
        %v1245 = vpop.f32.mrb[0].mxu0
        %1246 = vmatprep.mubr.f32.mxu0 0.0
        %1247 = vmatmul.mubr.f32.gmra.mrb[0].mxu0 %v893
        %v1248 = vpop.f32.mrb[0].mxu0
        %v1249 = vadd.f32 %v748, %v1248
        %v1250 = vpop.f32.mrb[0].mxu0
        %1251 = vmatprep.mubr.f32.mxu0 0.0
        %1252 = vmatmul.mubr.f32.gmra.mrb[0].mxu0 %v896
        %v1253 = vpop.f32.mrb[0].mxu0
        %v1254 = vadd.f32 %v748, %v1253
        %v1255 = vpop.f32.mrb[0].mxu0
        %1256 = vmatprep.mubr.f32.mxu0 0.0
        %1257 = vmatmul.mubr.f32.gmra.mrb[0].mxu0 %v899
        %v1258 = vpop.f32.mrb[0].mxu0
        %v1259 = vadd.f32 %v748, %v1258
        %v1260 = vpop.f32.mrb[0].mxu0
        %1261 = vmatprep.mubr.f32.mxu0 0.0
        %1262 = vmatmul.mubr.f32.gmra.mrb[0].mxu0 %v902
        %v1263 = vpop.f32.mrb[0].mxu0
        %v1264 = vadd.f32 %v748, %v1263
        %v1265 = vpop.f32.mrb[0].mxu0
        %1266 = vmatprep.mubr.f32.mxu0 0.0
        %1267 = vmatmul.mubr.f32.gmra.mrb[0].mxu0 %v905
        %v1268 = vpop.f32.mrb[0].mxu0
        %v1269 = vadd.f32 %v748, %v1268
        %v1270 = vpop.f32.mrb[0].mxu0
        %1271 = vmatprep.mubr.f32.mxu0 0.0
        %1272 = vmatmul.mubr.f32.gmra.mrb[0].mxu0 %v908
        %v1273 = vpop.f32.mrb[0].mxu0
        %v1274 = vadd.f32 %v748, %v1273
        %v1275 = vpop.f32.mrb[0].mxu0
        %1276 = vmatprep.mubr.f32.mxu0 0.0
        %1277 = vmatmul.mubr.f32.gmra.mrb[0].mxu0 %v911
        %v1278 = vpop.f32.mrb[0].mxu0
        %v1279 = vadd.f32 %v748, %v1278
        %v1280 = vpop.f32.mrb[0].mxu0
        %1281 = vmatprep.mubr.f32.mxu0 0.0
        %1282 = vmatmul.mubr.f32.gmra.mrb[0].mxu0 %v914
        %v1283 = vpop.f32.mrb[0].mxu0
        %v1284 = vadd.f32 %v748, %v1283
        %v1285 = vpop.f32.mrb[0].mxu0
        %1286 = vmatprep.mubr.f32.mxu0 0.0
        %1287 = vmatmul.mubr.f32.gmra.mrb[0].mxu0 %v917
        %v1288 = vpop.f32.mrb[0].mxu0
        %v1289 = vadd.f32 %v748, %v1288
        %v1290 = vpop.f32.mrb[0].mxu0
        %1291 = vmatprep.mubr.f32.mxu0 0.0
        %1292 = vmatmul.mubr.f32.gmra.mrb[0].mxu0 %v920
        %v1293 = vpop.f32.mrb[0].mxu0
        %v1294 = vadd.f32 %v748, %v1293
        %v1295 = vpop.f32.mrb[0].mxu0
        %1296 = vmatprep.mubr.f32.mxu0 0.0
        %1297 = vmatmul.mubr.f32.gmra.mrb[0].mxu0 %v923
        %v1298 = vpop.f32.mrb[0].mxu0
        %v1299 = vadd.f32 %v748, %v1298
        %v1300 = vpop.f32.mrb[0].mxu0
        %1301 = vmatprep.mubr.f32.mxu0 0.0
        %1302 = vmatmul.mubr.f32.gmra.mrb[0].mxu0 %v926
        %v1303 = vpop.f32.mrb[0].mxu0
        %v1304 = vadd.f32 %v748, %v1303
        %v1305 = vpop.f32.mrb[0].mxu0
        %1306 = vmatprep.mubr.f32.mxu0 0.0
        %1307 = vmatmul.mubr.f32.gmra.mrb[0].mxu0 %v929
        %v1308 = vpop.f32.mrb[0].mxu0
        %v1309 = vadd.f32 %v748, %v1308
        %v1310 = vpop.f32.mrb[0].mxu0
        %1311 = vmatprep.mubr.f32.mxu0 0.0
        %1312 = vmatmul.mubr.f32.gmra.mrb[0].mxu0 %v932
        %v1313 = vpop.f32.mrb[0].mxu0
        %v1314 = vadd.f32 %v748, %v1313
        %v1315 = vpop.f32.mrb[0].mxu0
        %1316 = vmatprep.mubr.f32.mxu0 0.0
        %1317 = vmatmul.mubr.f32.gmra.mrb[0].mxu0 %v935
        %v1318 = vpop.f32.mrb[0].mxu0
        %v1319 = vadd.f32 %v748, %v1318
        %v1320 = vpop.f32.mrb[0].mxu0
        %1321 = vmatprep.mubr.f32.mxu0 0.0
        %1322 = vmatmul.mubr.f32.gmra.mrb[0].mxu0 %v938
        %v1323 = vpop.f32.mrb[0].mxu0
        %v1324 = vadd.f32 %v748, %v1323
        %v1325 = vpop.f32.mrb[0].mxu0
        %1326 = vmatprep.mubr.f32.mxu0 0.0
        %1327 = vmatmul.mubr.f32.gmra.mrb[0].mxu0 %v941
        %v1328 = vpop.f32.mrb[0].mxu0
        %v1329 = vadd.f32 %v748, %v1328
        %v1330 = vpop.f32.mrb[0].mxu0
        %1331 = vdwg.mxu0
        %v1332 = vmax.f32 %v1014, 0.0
        %v1333 = vmax.f32 %v1019, 0.0
        %v1334 = vmax.f32 %v1024, 0.0
        %v1335 = vmax.f32 %v1029, 0.0
        %v1336 = vmax.f32 %v1034, 0.0
        %v1337 = vmax.f32 %v1039, 0.0
        %v1338 = vmax.f32 %v1044, 0.0
        %v1339 = vmax.f32 %v1049, 0.0
        %v1340 = vmax.f32 %v1054, 0.0
        %v1341 = vmax.f32 %v1059, 0.0
        %v1342 = vmax.f32 %v1064, 0.0
        %v1343 = vmax.f32 %v1069, 0.0
        %v1344 = vmax.f32 %v1074, 0.0
        %v1345 = vmax.f32 %v1079, 0.0
        %v1346 = vmax.f32 %v1084, 0.0
        %v1347 = vmax.f32 %v1089, 0.0
        %v1348 = vmax.f32 %v1094, 0.0
        %v1349 = vmax.f32 %v1099, 0.0
        %v1350 = vmax.f32 %v1104, 0.0
        %v1351 = vmax.f32 %v1109, 0.0
        %v1352 = vmax.f32 %v1114, 0.0
        %v1353 = vmax.f32 %v1119, 0.0
        %v1354 = vmax.f32 %v1124, 0.0
        %v1355 = vmax.f32 %v1129, 0.0
        %v1356 = vmax.f32 %v1134, 0.0
        %v1357 = vmax.f32 %v1139, 0.0
        %v1358 = vmax.f32 %v1144, 0.0
        %v1359 = vmax.f32 %v1149, 0.0
        %v1360 = vmax.f32 %v1154, 0.0
        %v1361 = vmax.f32 %v1159, 0.0
        %v1362 = vmax.f32 %v1164, 0.0
        %v1363 = vmax.f32 %v1169, 0.0
        %v1364 = vmax.f32 %v1174, 0.0
        %v1365 = vmax.f32 %v1179, 0.0
        %v1366 = vmax.f32 %v1184, 0.0
        %v1367 = vmax.f32 %v1189, 0.0
        %v1368 = vmax.f32 %v1194, 0.0
        %v1369 = vmax.f32 %v1199, 0.0
        %v1370 = vmax.f32 %v1204, 0.0
        %v1371 = vmax.f32 %v1209, 0.0
        %v1372 = vmax.f32 %v1214, 0.0
        %v1373 = vmax.f32 %v1219, 0.0
        %v1374 = vmax.f32 %v1224, 0.0
        %v1375 = vmax.f32 %v1229, 0.0
        %v1376 = vmax.f32 %v1234, 0.0
        %v1377 = vmax.f32 %v1239, 0.0
        %v1378 = vmax.f32 %v1244, 0.0
        %v1379 = vmax.f32 %v1249, 0.0
        %v1380 = vmax.f32 %v1254, 0.0
        %v1381 = vmax.f32 %v1259, 0.0
        %v1382 = vmax.f32 %v1264, 0.0
        %v1383 = vmax.f32 %v1269, 0.0
        %v1384 = vmax.f32 %v1274, 0.0
        %v1385 = vmax.f32 %v1279, 0.0
        %v1386 = vmax.f32 %v1284, 0.0
        %v1387 = vmax.f32 %v1289, 0.0
        %v1388 = vmax.f32 %v1294, 0.0
        %v1389 = vmax.f32 %v1299, 0.0
        %v1390 = vmax.f32 %v1304, 0.0
        %v1391 = vmax.f32 %v1309, 0.0
        %v1392 = vmax.f32 %v1314, 0.0
        %v1393 = vmax.f32 %v1319, 0.0
        %v1394 = vmax.f32 %v1324, 0.0
        %v1395 = vmax.f32 %v1329, 0.0
        %v1396 = vld [vmem:[%s564] sm:$0x1]
        %v1397 = vld [vmem:[%s572] sm:$0x1]
        %1399 = vset.pattern.permute.xlu0 0
        %1400 = vperm.xlu0 %1399, %v1397
        %v1401 = vpop.permute.xlu0 %1400
        %v1403 = vlaneseq
        %v1404 = vshrl.u32 %v1403, 7
        %v1405 = vsub.s32 0, %v1404
        %v1406 = vrot.slane %v1401, %v1405
        %v1408 = vsel %vm750, %v1396, 0
        %v1411 = vsel %vm750, %v1332, 0
        %v1414 = vsel %vm750, %v1333, 0
        %v1417 = vsel %vm750, %v1334, 0
        %v1420 = vsel %vm750, %v1335, 0
        %v1423 = vsel %vm750, %v1336, 0
        %v1426 = vsel %vm750, %v1337, 0
        %v1429 = vsel %vm750, %v1338, 0
        %v1432 = vsel %vm750, %v1339, 0
        %v1435 = vsel %vm750, %v1340, 0
        %v1438 = vsel %vm750, %v1341, 0
        %v1441 = vsel %vm750, %v1342, 0
        %v1444 = vsel %vm750, %v1343, 0
        %v1447 = vsel %vm750, %v1344, 0
        %v1450 = vsel %vm750, %v1345, 0
        %v1453 = vsel %vm750, %v1346, 0
        %v1456 = vsel %vm750, %v1347, 0
        %v1459 = vsel %vm750, %v1348, 0
        %v1462 = vsel %vm750, %v1349, 0
        %v1465 = vsel %vm750, %v1350, 0
        %v1468 = vsel %vm750, %v1351, 0
        %v1471 = vsel %vm750, %v1352, 0
        %v1474 = vsel %vm750, %v1353, 0
        %v1477 = vsel %vm750, %v1354, 0
        %v1480 = vsel %vm750, %v1355, 0
        %v1483 = vsel %vm750, %v1356, 0
        %v1486 = vsel %vm750, %v1357, 0
        %v1489 = vsel %vm750, %v1358, 0
        %v1492 = vsel %vm750, %v1359, 0
        %v1495 = vsel %vm750, %v1360, 0
        %v1498 = vsel %vm750, %v1361, 0
        %v1501 = vsel %vm750, %v1362, 0
        %v1504 = vsel %vm750, %v1363, 0
        %1506 = vmatprep.subr.mxu0 0.0
        %1507 = vmatpush1.xpose.msra.mxu0 %v1411
        %1508 = vmatprep.subr.mxu0 0.0
        %1509 = vmatpush1.xpose.msra.mxu0 %v1414
        %1510 = vmatprep.subr.mxu0 0.0
        %1511 = vmatpush1.xpose.msra.mxu0 %v1417
        %1512 = vmatprep.subr.mxu0 0.0
        %1513 = vmatpush1.xpose.msra.mxu0 %v1420
        %1514 = vmatprep.subr.mxu0 0.0
        %1515 = vmatpush1.xpose.msra.mxu0 %v1423
        %1516 = vmatprep.subr.mxu0 0.0
        %1517 = vmatpush1.xpose.msra.mxu0 %v1426
        %1518 = vmatprep.subr.mxu0 0.0
        %1519 = vmatpush1.xpose.msra.mxu0 %v1429
        %1520 = vmatprep.subr.mxu0 0.0
        %1521 = vmatpush1.xpose.msra.mxu0 %v1432
        %1522 = vmatprep.subr.mxu0 0.0
        %1523 = vmatpush1.xpose.msra.mxu0 %v1435
        %1524 = vmatprep.subr.mxu0 0.0
        %1525 = vmatpush1.xpose.msra.mxu0 %v1438
        %1526 = vmatprep.subr.mxu0 0.0
        %1527 = vmatpush1.xpose.msra.mxu0 %v1441
        %1528 = vmatprep.subr.mxu0 0.0
        %1529 = vmatpush1.xpose.msra.mxu0 %v1444
        %1530 = vmatprep.subr.mxu0 0.0
        %1531 = vmatpush1.xpose.msra.mxu0 %v1447
        %1532 = vmatprep.subr.mxu0 0.0
        %1533 = vmatpush1.xpose.msra.mxu0 %v1450
        %1534 = vmatprep.subr.mxu0 0.0
        %1535 = vmatpush1.xpose.msra.mxu0 %v1453
        %1536 = vmatprep.subr.mxu0 0.0
        %1537 = vmatpush1.xpose.msra.mxu0 %v1456
        %1538 = vmatprep.subr.mxu0 0.0
        %1539 = vmatpush1.xpose.msra.mxu0 %v1459
        %1540 = vmatprep.subr.mxu0 0.0
        %1541 = vmatpush1.xpose.msra.mxu0 %v1462
        %1542 = vmatprep.subr.mxu0 0.0
        %1543 = vmatpush1.xpose.msra.mxu0 %v1465
        %1544 = vmatprep.subr.mxu0 0.0
        %1545 = vmatpush1.xpose.msra.mxu0 %v1468
        %1546 = vmatprep.subr.mxu0 0.0
        %1547 = vmatpush1.xpose.msra.mxu0 %v1471
        %1548 = vmatprep.subr.mxu0 0.0
        %1549 = vmatpush1.xpose.msra.mxu0 %v1474
        %1550 = vmatprep.subr.mxu0 0.0
        %1551 = vmatpush1.xpose.msra.mxu0 %v1477
        %1552 = vmatprep.subr.mxu0 0.0
        %1553 = vmatpush1.xpose.msra.mxu0 %v1480
        %1554 = vmatprep.subr.mxu0 0.0
        %1555 = vmatpush1.xpose.msra.mxu0 %v1483
        %1556 = vmatprep.subr.mxu0 0.0
        %1557 = vmatpush1.xpose.msra.mxu0 %v1486
        %1558 = vmatprep.subr.mxu0 0.0
        %1559 = vmatpush1.xpose.msra.mxu0 %v1489
        %1560 = vmatprep.subr.mxu0 0.0
        %1561 = vmatpush1.xpose.msra.mxu0 %v1492
        %1562 = vmatprep.subr.mxu0 0.0
        %1563 = vmatpush1.xpose.msra.mxu0 %v1495
        %1564 = vmatprep.subr.mxu0 0.0
        %1565 = vmatpush1.xpose.msra.mxu0 %v1498
        %1566 = vmatprep.subr.mxu0 0.0
        %1567 = vmatpush1.xpose.msra.mxu0 %v1501
        %1568 = vmatprep.subr.mxu0 0.0
        %1569 = vmatpush1.xpose.msra.mxu0 %v1504
        %1570 = vmatprep.mubr.f32.mxu0 0.0
        %1571 = vmatmul.mubr.f32.gmra.mrb[0].mxu0 %v1408
        %v1572 = vpop.f32.mrb[0].mxu0
        %v1573 = vadd.f32 %v1406, %v1572
        %v1574 = vpop.f32.mrb[0].mxu0
        %v1575 = vadd.f32 %v1406, %v1574
        %1576 = vdwg.mxu0
        %v1578 = vsel %vm750, %v1364, 0
        %v1581 = vsel %vm750, %v1365, 0
        %v1584 = vsel %vm750, %v1366, 0
        %v1587 = vsel %vm750, %v1367, 0
        %v1590 = vsel %vm750, %v1368, 0
        %v1593 = vsel %vm750, %v1369, 0
        %v1596 = vsel %vm750, %v1370, 0
        %v1599 = vsel %vm750, %v1371, 0
        %v1602 = vsel %vm750, %v1372, 0
        %v1605 = vsel %vm750, %v1373, 0
        %v1608 = vsel %vm750, %v1374, 0
        %v1611 = vsel %vm750, %v1375, 0
        %v1614 = vsel %vm750, %v1376, 0
        %v1617 = vsel %vm750, %v1377, 0
        %v1620 = vsel %vm750, %v1378, 0
        %v1623 = vsel %vm750, %v1379, 0
        %v1626 = vsel %vm750, %v1380, 0
        %v1629 = vsel %vm750, %v1381, 0
        %v1632 = vsel %vm750, %v1382, 0
        %v1635 = vsel %vm750, %v1383, 0
        %v1638 = vsel %vm750, %v1384, 0
        %v1641 = vsel %vm750, %v1385, 0
        %v1644 = vsel %vm750, %v1386, 0
        %v1647 = vsel %vm750, %v1387, 0
        %v1650 = vsel %vm750, %v1388, 0
        %v1653 = vsel %vm750, %v1389, 0
        %v1656 = vsel %vm750, %v1390, 0
        %v1659 = vsel %vm750, %v1391, 0
        %v1662 = vsel %vm750, %v1392, 0
        %v1665 = vsel %vm750, %v1393, 0
        %v1668 = vsel %vm750, %v1394, 0
        %v1671 = vsel %vm750, %v1395, 0
        %1673 = vmatprep.subr.mxu0 0.0
        %1674 = vmatpush1.xpose.msra.mxu0 %v1578
        %1675 = vmatprep.subr.mxu0 0.0
        %1676 = vmatpush1.xpose.msra.mxu0 %v1581
        %1677 = vmatprep.subr.mxu0 0.0
        %1678 = vmatpush1.xpose.msra.mxu0 %v1584
        %1679 = vmatprep.subr.mxu0 0.0
        %1680 = vmatpush1.xpose.msra.mxu0 %v1587
        %1681 = vmatprep.subr.mxu0 0.0
        %1682 = vmatpush1.xpose.msra.mxu0 %v1590
        %1683 = vmatprep.subr.mxu0 0.0
        %1684 = vmatpush1.xpose.msra.mxu0 %v1593
        %1685 = vmatprep.subr.mxu0 0.0
        %1686 = vmatpush1.xpose.msra.mxu0 %v1596
        %1687 = vmatprep.subr.mxu0 0.0
        %1688 = vmatpush1.xpose.msra.mxu0 %v1599
        %1689 = vmatprep.subr.mxu0 0.0
        %1690 = vmatpush1.xpose.msra.mxu0 %v1602
        %1691 = vmatprep.subr.mxu0 0.0
        %1692 = vmatpush1.xpose.msra.mxu0 %v1605
        %1693 = vmatprep.subr.mxu0 0.0
        %1694 = vmatpush1.xpose.msra.mxu0 %v1608
        %1695 = vmatprep.subr.mxu0 0.0
        %1696 = vmatpush1.xpose.msra.mxu0 %v1611
        %1697 = vmatprep.subr.mxu0 0.0
        %1698 = vmatpush1.xpose.msra.mxu0 %v1614
        %1699 = vmatprep.subr.mxu0 0.0
        %1700 = vmatpush1.xpose.msra.mxu0 %v1617
        %1701 = vmatprep.subr.mxu0 0.0
        %1702 = vmatpush1.xpose.msra.mxu0 %v1620
        %1703 = vmatprep.subr.mxu0 0.0
        %1704 = vmatpush1.xpose.msra.mxu0 %v1623
        %1705 = vmatprep.subr.mxu0 0.0
        %1706 = vmatpush1.xpose.msra.mxu0 %v1626
        %1707 = vmatprep.subr.mxu0 0.0
        %1708 = vmatpush1.xpose.msra.mxu0 %v1629
        %1709 = vmatprep.subr.mxu0 0.0
        %1710 = vmatpush1.xpose.msra.mxu0 %v1632
        %1711 = vmatprep.subr.mxu0 0.0
        %1712 = vmatpush1.xpose.msra.mxu0 %v1635
        %1713 = vmatprep.subr.mxu0 0.0
        %1714 = vmatpush1.xpose.msra.mxu0 %v1638
        %1715 = vmatprep.subr.mxu0 0.0
        %1716 = vmatpush1.xpose.msra.mxu0 %v1641
        %1717 = vmatprep.subr.mxu0 0.0
        %1718 = vmatpush1.xpose.msra.mxu0 %v1644
        %1719 = vmatprep.subr.mxu0 0.0
        %1720 = vmatpush1.xpose.msra.mxu0 %v1647
        %1721 = vmatprep.subr.mxu0 0.0
        %1722 = vmatpush1.xpose.msra.mxu0 %v1650
        %1723 = vmatprep.subr.mxu0 0.0
        %1724 = vmatpush1.xpose.msra.mxu0 %v1653
        %1725 = vmatprep.subr.mxu0 0.0
        %1726 = vmatpush1.xpose.msra.mxu0 %v1656
        %1727 = vmatprep.subr.mxu0 0.0
        %1728 = vmatpush1.xpose.msra.mxu0 %v1659
        %1729 = vmatprep.subr.mxu0 0.0
        %1730 = vmatpush1.xpose.msra.mxu0 %v1662
        %1731 = vmatprep.subr.mxu0 0.0
        %1732 = vmatpush1.xpose.msra.mxu0 %v1665
        %1733 = vmatprep.subr.mxu0 0.0
        %1734 = vmatpush1.xpose.msra.mxu0 %v1668
        %1735 = vmatprep.subr.mxu0 0.0
        %1736 = vmatpush1.xpose.msra.mxu0 %v1671
        %1737 = vmatprep.mubr.f32.mxu0 0.0
        %1738 = vmatmul.mubr.f32.gmra.mrb[0].mxu0 %v1408
        %v1739 = vpop.f32.mrb[0].mxu0
        %v1740 = vadd.f32 %v1406, %v1739
        %v1741 = vpop.f32.mrb[0].mxu0
        %v1742 = vadd.f32 %v1406, %v1741
        %1743 = vdwg.mxu0
        %v1744 = vxor.u32 %v1573, 2147483648
        %v1745 = vxor.u32 %v1575, 2147483648
        %v1746 = vxor.u32 %v1740, 2147483648
        %v1747 = vxor.u32 %v1742, 2147483648
        %v1748 = vmul.f32 %v1744, 1.442695
        %v1749 = vpow.pop %v1748
        %v1750 = vmul.f32 %v1745, 1.442695
        %v1751 = vpow.pop %v1750
        %v1752 = vmul.f32 %v1746, 1.442695
        %v1753 = vpow.pop %v1752
        %v1754 = vmul.f32 %v1747, 1.442695
        %v1755 = vpow.pop %v1754
        %v1756 = vadd.f32 %v1749, 1.0
        %v1757 = vadd.f32 %v1751, 1.0
        %v1758 = vadd.f32 %v1753, 1.0
        %v1759 = vadd.f32 %v1755, 1.0
        %v1760 = vrcp.pop %v1756
        %v1761 = vmul.f32 1.0, %v1760
        %v1762 = vrcp.pop %v1757
        %v1763 = vmul.f32 1.0, %v1762
        %v1764 = vrcp.pop %v1758
        %v1765 = vmul.f32 1.0, %v1764
        %v1766 = vrcp.pop %v1759
        %v1767 = vmul.f32 1.0, %v1766
        %v1772 = vcombine.low %v1761, %v1763
        %v1774 = vunpack.c.l.s4 1966171168
        %v1775 = vunpack.c.0.s8 %v1774
        %v1776 = vlaneseq
        %v1777 = vshrl.u32 %v1776, 7
        %v1778 = vsub.s32 %v1775, %v1777
        %v1779 = vrot.slane %v1772, %v1778
        %v1781 = vunpack.c.l.s4 1966171168
        %v1782 = vunpack.c.0.s8 %v1781
        %v1783 = vlaneseq
        %v1784 = vshrl.u32 %v1783, 7
        %v1785 = vsub.s32 %v1782, %v1784
        %v1786 = vrot.slane %v1779, %v1785
        %v1787 = vcombine.low %v1765, %v1767
        %v1789 = vunpack.c.l.s4 1966171168
        %v1790 = vunpack.c.0.s8 %v1789
        %v1791 = vlaneseq
        %v1792 = vshrl.u32 %v1791, 7
        %v1793 = vsub.s32 %v1790, %v1792
        %v1794 = vrot.slane %v1787, %v1793
        %v1796 = vunpack.c.l.s4 1966171168
        %v1797 = vunpack.c.0.s8 %v1796
        %v1798 = vlaneseq
        %v1799 = vshrl.u32 %v1798, 7
        %v1800 = vsub.s32 %v1797, %v1799
        %v1801 = vrot.slane %v1794, %v1800
        %v1804 = vlaneseq
        %vm1805 = vcmp.ge.s32.totalorder %v1804, 0
        %vm1806 = vcmp.lt.s32.totalorder %v1804, 256
        %vm1807 = vmand %vm1805, %vm1806
        %1808 = vst.msk [vmem:[%s673] sm:$0x3] %vm1807, %v1786
        %1809 = vst.msk [vmem:[%s673 + $0x2] sm:$0x3] %vm1807, %v1801
        %1810 = vmatprep.subr.mxu0 0.0
        %1811 = vmatpush1.msra.mxu0 %v678
        %1812 = vmatprep.subr.mxu0 0.0
        %1813 = vmatpush1.msra.mxu0 %v679
        %1814 = vmatprep.subr.mxu0 0.0
        %1815 = vmatpush1.msra.mxu0 %v680
        %1816 = vmatprep.subr.mxu0 0.0
        %1817 = vmatpush1.msra.mxu0 %v681
        %1818 = vmatprep.subr.mxu0 0.0
        %1819 = vmatpush1.msra.mxu0 %v682
        %1820 = vmatprep.subr.mxu0 0.0
        %1821 = vmatpush1.msra.mxu0 %v683
        %1822 = vmatprep.subr.mxu0 0.0
        %1823 = vmatpush1.msra.mxu0 %v684
        %1824 = vmatprep.subr.mxu0 0.0
        %1825 = vmatpush1.msra.mxu0 %v685
        %1826 = vmatprep.subr.mxu0 0.0
        %1827 = vmatpush1.msra.mxu0 %v686
        %1828 = vmatprep.subr.mxu0 0.0
        %1829 = vmatpush1.msra.mxu0 %v687
        %1830 = vmatprep.subr.mxu0 0.0
        %1831 = vmatpush1.msra.mxu0 %v688
        %1832 = vmatprep.subr.mxu0 0.0
        %1833 = vmatpush1.msra.mxu0 %v689
        %1834 = vmatprep.subr.mxu0 0.0
        %1835 = vmatpush1.msra.mxu0 %v690
        %1836 = vmatprep.subr.mxu0 0.0
        %1837 = vmatpush1.msra.mxu0 %v691
        %1838 = vmatprep.subr.mxu0 0.0
        %1839 = vmatpush1.msra.mxu0 %v692
        %1840 = vmatprep.subr.mxu0 0.0
        %1841 = vmatpush1.msra.mxu0 %v693
        %1842 = vmatprep.subr.mxu0 0.0
        %1843 = vmatpush1.msra.mxu0 %v694
        %1844 = vmatprep.subr.mxu0 0.0
        %1845 = vmatpush1.msra.mxu0 %v695
        %1846 = vmatprep.subr.mxu0 0.0
        %1847 = vmatpush1.msra.mxu0 %v696
        %1848 = vmatprep.subr.mxu0 0.0
        %1849 = vmatpush1.msra.mxu0 %v697
        %1850 = vmatprep.subr.mxu0 0.0
        %1851 = vmatpush1.msra.mxu0 %v698
        %1852 = vmatprep.subr.mxu0 0.0
        %1853 = vmatpush1.msra.mxu0 %v699
        %1854 = vmatprep.subr.mxu0 0.0
        %1855 = vmatpush1.msra.mxu0 %v700
        %1856 = vmatprep.subr.mxu0 0.0
        %1857 = vmatpush1.msra.mxu0 %v701
        %1858 = vmatprep.subr.mxu0 0.0
        %1859 = vmatpush1.msra.mxu0 %v702
        %1860 = vmatprep.subr.mxu0 0.0
        %1861 = vmatpush1.msra.mxu0 %v703
        %1862 = vmatprep.subr.mxu0 0.0
        %1863 = vmatpush1.msra.mxu0 %v704
        %1864 = vmatprep.subr.mxu0 0.0
        %1865 = vmatpush1.msra.mxu0 %v705
        %1866 = vmatprep.subr.mxu0 0.0
        %1867 = vmatpush1.msra.mxu0 %v706
        %1868 = vmatprep.subr.mxu0 0.0
        %1869 = vmatpush1.msra.mxu0 %v707
        %1870 = vmatprep.subr.mxu0 0.0
        %1871 = vmatpush1.msra.mxu0 %v708
        %1872 = vmatprep.subr.mxu0 0.0
        %1873 = vmatpush1.msra.mxu0 %v709
        %1874 = vmatprep.mubr.f32.mxu0 %v1763
        %1875 = vmatmul.mubr.f32.gmra.mrb[0].mxu0 %v1761
        %v1876 = vpop.f32.mrb[0].mxu0
        %v1877 = vadd.f32 0.0, %v1876
        %v1878 = vpop.f32.mrb[0].mxu0
        %1879 = vdwg.mxu0
        %1880 = vmatprep.subr.mxu0 0.0
        %1881 = vmatpush1.msra.mxu0 %v710
        %1882 = vmatprep.subr.mxu0 0.0
        %1883 = vmatpush1.msra.mxu0 %v711
        %1884 = vmatprep.subr.mxu0 0.0
        %1885 = vmatpush1.msra.mxu0 %v712
        %1886 = vmatprep.subr.mxu0 0.0
        %1887 = vmatpush1.msra.mxu0 %v713
        %1888 = vmatprep.subr.mxu0 0.0
        %1889 = vmatpush1.msra.mxu0 %v714
        %1890 = vmatprep.subr.mxu0 0.0
        %1891 = vmatpush1.msra.mxu0 %v715
        %1892 = vmatprep.subr.mxu0 0.0
        %1893 = vmatpush1.msra.mxu0 %v716
        %1894 = vmatprep.subr.mxu0 0.0
        %1895 = vmatpush1.msra.mxu0 %v717
        %1896 = vmatprep.subr.mxu0 0.0
        %1897 = vmatpush1.msra.mxu0 %v718
        %1898 = vmatprep.subr.mxu0 0.0
        %1899 = vmatpush1.msra.mxu0 %v719
        %1900 = vmatprep.subr.mxu0 0.0
        %1901 = vmatpush1.msra.mxu0 %v720
        %1902 = vmatprep.subr.mxu0 0.0
        %1903 = vmatpush1.msra.mxu0 %v721
        %1904 = vmatprep.subr.mxu0 0.0
        %1905 = vmatpush1.msra.mxu0 %v722
        %1906 = vmatprep.subr.mxu0 0.0
        %1907 = vmatpush1.msra.mxu0 %v723
        %1908 = vmatprep.subr.mxu0 0.0
        %1909 = vmatpush1.msra.mxu0 %v724
        %1910 = vmatprep.subr.mxu0 0.0
        %1911 = vmatpush1.msra.mxu0 %v725
        %1912 = vmatprep.subr.mxu0 0.0
        %1913 = vmatpush1.msra.mxu0 %v726
        %1914 = vmatprep.subr.mxu0 0.0
        %1915 = vmatpush1.msra.mxu0 %v727
        %1916 = vmatprep.subr.mxu0 0.0
        %1917 = vmatpush1.msra.mxu0 %v728
        %1918 = vmatprep.subr.mxu0 0.0
        %1919 = vmatpush1.msra.mxu0 %v729
        %1920 = vmatprep.subr.mxu0 0.0
        %1921 = vmatpush1.msra.mxu0 %v730
        %1922 = vmatprep.subr.mxu0 0.0
        %1923 = vmatpush1.msra.mxu0 %v731
        %1924 = vmatprep.subr.mxu0 0.0
        %1925 = vmatpush1.msra.mxu0 %v732
        %1926 = vmatprep.subr.mxu0 0.0
        %1927 = vmatpush1.msra.mxu0 %v733
        %1928 = vmatprep.subr.mxu0 0.0
        %1929 = vmatpush1.msra.mxu0 %v734
        %1930 = vmatprep.subr.mxu0 0.0
        %1931 = vmatpush1.msra.mxu0 %v735
        %1932 = vmatprep.subr.mxu0 0.0
        %1933 = vmatpush1.msra.mxu0 %v736
        %1934 = vmatprep.subr.mxu0 0.0
        %1935 = vmatpush1.msra.mxu0 %v737
        %1936 = vmatprep.subr.mxu0 0.0
        %1937 = vmatpush1.msra.mxu0 %v738
        %1938 = vmatprep.subr.mxu0 0.0
        %1939 = vmatpush1.msra.mxu0 %v739
        %1940 = vmatprep.subr.mxu0 0.0
        %1941 = vmatpush1.msra.mxu0 %v740
        %1942 = vmatprep.subr.mxu0 0.0
        %1943 = vmatpush1.msra.mxu0 %v741
        %1944 = vmatprep.mubr.f32.mxu0 %v1767
        %1945 = vmatmul.mubr.f32.gmra.mrb[0].mxu0 %v1765
        %v1946 = vpop.f32.mrb[0].mxu0
        %v1947 = vadd.f32 0.0, %v1946
        %v1948 = vpop.f32.mrb[0].mxu0
        %1949 = vdwg.mxu0
        %v1950 = vmul.f32 %v1877, 0.00390625
        %v1951 = vmul.f32 %v1947, 0.00390625
        %v1952 = vld [vmem:[%s581] sm:$0xff]
        %v1953 = vld [vmem:[%s581 + $0x8] sm:$0xff]
        %v1954 = vld [vmem:[%s590] sm:$0xf]
        %v1957 = vrot.slane %v1951, 7
        %vm1958 = vcmask 1041409
        %v1959 = vsel %vm1958, %v1957, %v1950
        %v1962 = vcombine.high %v1952, %v1952
        %v1963 = vcombine.high %v1953, %v1953
        %v1965 = vcombine.low %v1954, %v1954
        %v1967 = vunpack.c.l.s4 1966171168
        %v1968 = vunpack.c.0.s8 %v1967
        %v1969 = vlaneseq
        %v1970 = vshrl.u32 %v1969, 7
        %v1971 = vsub.s32 %v1968, %v1970
        %v1972 = vrot.slane %v1965, %v1971
        %v1973 = vcombine.high %v1972, %v1972
        %v1975 = vunpack.c.l.s4 1966171168
        %v1976 = vunpack.c.0.s8 %v1975
        %v1977 = vlaneseq
        %v1978 = vshrl.u32 %v1977, 7
        %v1979 = vsub.s32 %v1976, %v1978
        %v1980 = vrot.slane %v1972, %v1979
        %v1982 = vunpack.c.l.s4 1966171168
        %v1983 = vunpack.c.0.s8 %v1982
        %v1984 = vlaneseq
        %v1985 = vshrl.u32 %v1984, 7
        %v1986 = vsub.s32 %v1983, %v1985
        %v1987 = vrot.slane %v1973, %v1986
        %v1988 = vcombine.high %v1980, %v1980
        %v1989 = vcombine.high %v1987, %v1987
        %v1994 = vsel %vm750, %v1959, 0
        %v1996 = vsel %vm943, %v1952, 0
        %v1998 = vsel %vm943, %v1962, 0
        %v2000 = vsel %vm943, %v1953, 0
        %v2002 = vsel %vm943, %v1963, 0
        %2004 = vmatprep.subr.mxu0 %v1998
        %2005 = vmatpush1.msra.mxu0 %v1996
        %2006 = vmatprep.subr.mxu0 0.0
        %2007 = vmatpush1.msra.mxu0 0.0
        %2008 = vmatprep.subr.mxu0 0.0
        %2009 = vmatpush1.msra.mxu0 0.0
        %2010 = vmatprep.subr.mxu0 0.0
        %2011 = vmatpush1.msra.mxu0 0.0
        %2012 = vmatprep.subr.mxu0 0.0
        %2013 = vmatpush1.msra.mxu0 0.0
        %2014 = vmatprep.subr.mxu0 0.0
        %2015 = vmatpush1.msra.mxu0 0.0
        %2016 = vmatprep.subr.mxu0 0.0
        %2017 = vmatpush1.msra.mxu0 0.0
        %2018 = vmatprep.subr.mxu0 0.0
        %2019 = vmatpush1.msra.mxu0 0.0
        %2020 = vmatprep.subr.mxu0 0.0
        %2021 = vmatpush1.msra.mxu0 0.0
        %2022 = vmatprep.subr.mxu0 0.0
        %2023 = vmatpush1.msra.mxu0 0.0
        %2024 = vmatprep.subr.mxu0 0.0
        %2025 = vmatpush1.msra.mxu0 0.0
        %2026 = vmatprep.subr.mxu0 0.0
        %2027 = vmatpush1.msra.mxu0 0.0
        %2028 = vmatprep.subr.mxu0 0.0
        %2029 = vmatpush1.msra.mxu0 0.0
        %2030 = vmatprep.subr.mxu0 0.0
        %2031 = vmatpush1.msra.mxu0 0.0
        %2032 = vmatprep.subr.mxu0 0.0
        %2033 = vmatpush1.msra.mxu0 0.0
        %2034 = vmatprep.subr.mxu0 0.0
        %2035 = vmatpush1.msra.mxu0 0.0
        %2036 = vmatprep.subr.mxu0 0.0
        %2037 = vmatpush1.msra.mxu0 0.0
        %2038 = vmatprep.subr.mxu0 0.0
        %2039 = vmatpush1.msra.mxu0 0.0
        %2040 = vmatprep.subr.mxu0 0.0
        %2041 = vmatpush1.msra.mxu0 0.0
        %2042 = vmatprep.subr.mxu0 0.0
        %2043 = vmatpush1.msra.mxu0 0.0
        %2044 = vmatprep.subr.mxu0 0.0
        %2045 = vmatpush1.msra.mxu0 0.0
        %2046 = vmatprep.subr.mxu0 0.0
        %2047 = vmatpush1.msra.mxu0 0.0
        %2048 = vmatprep.subr.mxu0 0.0
        %2049 = vmatpush1.msra.mxu0 0.0
        %2050 = vmatprep.subr.mxu0 0.0
        %2051 = vmatpush1.msra.mxu0 0.0
        %2052 = vmatprep.subr.mxu0 0.0
        %2053 = vmatpush1.msra.mxu0 0.0
        %2054 = vmatprep.subr.mxu0 0.0
        %2055 = vmatpush1.msra.mxu0 0.0
        %2056 = vmatprep.subr.mxu0 0.0
        %2057 = vmatpush1.msra.mxu0 0.0
        %2058 = vmatprep.subr.mxu0 0.0
        %2059 = vmatpush1.msra.mxu0 0.0
        %2060 = vmatprep.subr.mxu0 0.0
        %2061 = vmatpush1.msra.mxu0 0.0
        %2062 = vmatprep.subr.mxu0 0.0
        %2063 = vmatpush1.msra.mxu0 0.0
        %2064 = vmatprep.subr.mxu0 0.0
        %2065 = vmatpush1.msra.mxu0 0.0
        %2066 = vmatprep.subr.mxu0 0.0
        %2067 = vmatpush1.msra.mxu0 0.0
        %2068 = vmatprep.mubr.f32.mxu0 0.0
        %2069 = vmatmul.mubr.f32.gmra.mrb[0].mxu0 %v1994
        %v2070 = vpop.f32.mrb[0].mxu0
        %v2071 = vadd.f32 %v1980, %v2070
        %v2072 = vpop.f32.mrb[0].mxu0
        %v2073 = vadd.f32 %v1987, %v2072
        %2074 = vdwg.mxu0
        %2075 = vmatprep.subr.mxu0 %v2002
        %2076 = vmatpush1.msra.mxu0 %v2000
        %2077 = vmatprep.subr.mxu0 0.0
        %2078 = vmatpush1.msra.mxu0 0.0
        %2079 = vmatprep.subr.mxu0 0.0
        %2080 = vmatpush1.msra.mxu0 0.0
        %2081 = vmatprep.subr.mxu0 0.0
        %2082 = vmatpush1.msra.mxu0 0.0
        %2083 = vmatprep.subr.mxu0 0.0
        %2084 = vmatpush1.msra.mxu0 0.0
        %2085 = vmatprep.subr.mxu0 0.0
        %2086 = vmatpush1.msra.mxu0 0.0
        %2087 = vmatprep.subr.mxu0 0.0
        %2088 = vmatpush1.msra.mxu0 0.0
        %2089 = vmatprep.subr.mxu0 0.0
        %2090 = vmatpush1.msra.mxu0 0.0
        %2091 = vmatprep.subr.mxu0 0.0
        %2092 = vmatpush1.msra.mxu0 0.0
        %2093 = vmatprep.subr.mxu0 0.0
        %2094 = vmatpush1.msra.mxu0 0.0
        %2095 = vmatprep.subr.mxu0 0.0
        %2096 = vmatpush1.msra.mxu0 0.0
        %2097 = vmatprep.subr.mxu0 0.0
        %2098 = vmatpush1.msra.mxu0 0.0
        %2099 = vmatprep.subr.mxu0 0.0
        %2100 = vmatpush1.msra.mxu0 0.0
        %2101 = vmatprep.subr.mxu0 0.0
        %2102 = vmatpush1.msra.mxu0 0.0
        %2103 = vmatprep.subr.mxu0 0.0
        %2104 = vmatpush1.msra.mxu0 0.0
        %2105 = vmatprep.subr.mxu0 0.0
        %2106 = vmatpush1.msra.mxu0 0.0
        %2107 = vmatprep.subr.mxu0 0.0
        %2108 = vmatpush1.msra.mxu0 0.0
        %2109 = vmatprep.subr.mxu0 0.0
        %2110 = vmatpush1.msra.mxu0 0.0
        %2111 = vmatprep.subr.mxu0 0.0
        %2112 = vmatpush1.msra.mxu0 0.0
        %2113 = vmatprep.subr.mxu0 0.0
        %2114 = vmatpush1.msra.mxu0 0.0
        %2115 = vmatprep.subr.mxu0 0.0
        %2116 = vmatpush1.msra.mxu0 0.0
        %2117 = vmatprep.subr.mxu0 0.0
        %2118 = vmatpush1.msra.mxu0 0.0
        %2119 = vmatprep.subr.mxu0 0.0
        %2120 = vmatpush1.msra.mxu0 0.0
        %2121 = vmatprep.subr.mxu0 0.0
        %2122 = vmatpush1.msra.mxu0 0.0
        %2123 = vmatprep.subr.mxu0 0.0
        %2124 = vmatpush1.msra.mxu0 0.0
        %2125 = vmatprep.subr.mxu0 0.0
        %2126 = vmatpush1.msra.mxu0 0.0
        %2127 = vmatprep.subr.mxu0 0.0
        %2128 = vmatpush1.msra.mxu0 0.0
        %2129 = vmatprep.subr.mxu0 0.0
        %2130 = vmatpush1.msra.mxu0 0.0
        %2131 = vmatprep.subr.mxu0 0.0
        %2132 = vmatpush1.msra.mxu0 0.0
        %2133 = vmatprep.subr.mxu0 0.0
        %2134 = vmatpush1.msra.mxu0 0.0
        %2135 = vmatprep.subr.mxu0 0.0
        %2136 = vmatpush1.msra.mxu0 0.0
        %2137 = vmatprep.subr.mxu0 0.0
        %2138 = vmatpush1.msra.mxu0 0.0
        %2139 = vmatprep.mubr.f32.mxu0 0.0
        %2140 = vmatmul.mubr.f32.gmra.mrb[0].mxu0 %v1994
        %v2141 = vpop.f32.mrb[0].mxu0
        %v2142 = vadd.f32 %v1988, %v2141
        %v2143 = vpop.f32.mrb[0].mxu0
        %v2144 = vadd.f32 %v1989, %v2143
        %2145 = vdwg.mxu0
        %v2150 = vcombine.low %v2071, %v2073
        %v2151 = vcombine.low %v2142, %v2144
        %v2153 = vunpack.c.l.s4 1966171168
        %v2154 = vunpack.c.0.s8 %v2153
        %v2155 = vlaneseq
        %v2156 = vshrl.u32 %v2155, 7
        %v2157 = vsub.s32 %v2154, %v2156
        %v2158 = vrot.slane %v2150, %v2157
        %v2160 = vunpack.c.l.s4 1966171168
        %v2161 = vunpack.c.0.s8 %v2160
        %v2162 = vlaneseq
        %v2163 = vshrl.u32 %v2162, 7
        %v2164 = vsub.s32 %v2161, %v2163
        %v2165 = vrot.slane %v2151, %v2164
        %v2166 = vcombine.low %v2158, %v2165
        %v2167 = vcombine.high %v2158, %v2165
        %v2169 = vunpack.c.l.s4 1966171168
        %v2170 = vunpack.c.0.s8 %v2169
        %v2171 = vlaneseq
        %v2172 = vshrl.u32 %v2171, 7
        %v2173 = vsub.s32 %v2170, %v2172
        %v2174 = vrot.slane %v2166, %v2173
        %v2176 = vunpack.c.l.s4 1966171168
        %v2177 = vunpack.c.0.s8 %v2176
        %v2178 = vlaneseq
        %v2179 = vshrl.u32 %v2178, 7
        %v2180 = vsub.s32 %v2177, %v2179
        %v2181 = vrot.slane %v2167, %v2180
        %vm2184 = vcmp.lt.s32.totalorder %v1804, 512
        %vm2185 = vmand %vm1805, %vm2184
        %2186 = vst.msk [vmem:[%s666] sm:$0xf] %vm2185, %v2174
        %2187 = vst.msk [vmem:[%s666 + $0x4] sm:$0xf] %vm2185, %v2181
        %v2188 = vld [vmem:[%s599] sm:$0xff]
        %v2189 = vld [vmem:[%s599 + $0x8] sm:$0xff]
        %v2190 = vld [vmem:[%s599 + $0x10] sm:$0xff]
        %v2191 = vld [vmem:[%s599 + $0x18] sm:$0xff]
        %v2192 = vld [vmem:[%s599 + $0x20] sm:$0xff]
        %v2193 = vld [vmem:[%s599 + $0x28] sm:$0xff]
        %v2194 = vld [vmem:[%s599 + $0x30] sm:$0xff]
        %v2195 = vld [vmem:[%s599 + $0x38] sm:$0xff]
        %v2196 = vld [vmem:[%s599 + $0x40] sm:$0xff]
        %v2197 = vld [vmem:[%s599 + $0x48] sm:$0xff]
        %v2198 = vld [vmem:[%s599 + $0x50] sm:$0xff]
        %v2199 = vld [vmem:[%s599 + $0x58] sm:$0xff]
        %v2200 = vld [vmem:[%s599 + $0x60] sm:$0xff]
        %v2201 = vld [vmem:[%s599 + $0x68] sm:$0xff]
        %v2202 = vld [vmem:[%s599 + $0x70] sm:$0xff]
        %v2203 = vld [vmem:[%s599 + $0x78] sm:$0xff]
        %v2204 = vld [vmem:[%s599 + $0x80] sm:$0xff]
        %v2205 = vld [vmem:[%s599 + $0x88] sm:$0xff]
        %v2206 = vld [vmem:[%s599 + $0x90] sm:$0xff]
        %v2207 = vld [vmem:[%s599 + $0x98] sm:$0xff]
        %v2208 = vld [vmem:[%s599 + $0xa0] sm:$0xff]
        %v2209 = vld [vmem:[%s599 + $0xa8] sm:$0xff]
        %v2210 = vld [vmem:[%s599 + $0xb0] sm:$0xff]
        %v2211 = vld [vmem:[%s599 + $0xb8] sm:$0xff]
        %v2212 = vld [vmem:[%s599 + $0xc0] sm:$0xff]
        %v2213 = vld [vmem:[%s599 + $0xc8] sm:$0xff]
        %v2214 = vld [vmem:[%s599 + $0xd0] sm:$0xff]
        %v2215 = vld [vmem:[%s599 + $0xd8] sm:$0xff]
        %v2216 = vld [vmem:[%s599 + $0xe0] sm:$0xff]
        %v2217 = vld [vmem:[%s599 + $0xe8] sm:$0xff]
        %v2218 = vld [vmem:[%s599 + $0xf0] sm:$0xff]
        %v2219 = vld [vmem:[%s599 + $0xf8] sm:$0xff]
        %v2220 = vld [vmem:[%s599 + $0x100] sm:$0xff]
        %v2221 = vld [vmem:[%s599 + $0x108] sm:$0xff]
        %v2222 = vld [vmem:[%s599 + $0x110] sm:$0xff]
        %v2223 = vld [vmem:[%s599 + $0x118] sm:$0xff]
        %v2224 = vld [vmem:[%s599 + $0x120] sm:$0xff]
        %v2225 = vld [vmem:[%s599 + $0x128] sm:$0xff]
        %v2226 = vld [vmem:[%s599 + $0x130] sm:$0xff]
        %v2227 = vld [vmem:[%s599 + $0x138] sm:$0xff]
        %v2228 = vld [vmem:[%s599 + $0x140] sm:$0xff]
        %v2229 = vld [vmem:[%s599 + $0x148] sm:$0xff]
        %v2230 = vld [vmem:[%s599 + $0x150] sm:$0xff]
        %v2231 = vld [vmem:[%s599 + $0x158] sm:$0xff]
        %v2232 = vld [vmem:[%s599 + $0x160] sm:$0xff]
        %v2233 = vld [vmem:[%s599 + $0x168] sm:$0xff]
        %v2234 = vld [vmem:[%s599 + $0x170] sm:$0xff]
        %v2235 = vld [vmem:[%s599 + $0x178] sm:$0xff]
        %v2236 = vld [vmem:[%s599 + $0x180] sm:$0xff]
        %v2237 = vld [vmem:[%s599 + $0x188] sm:$0xff]
        %v2238 = vld [vmem:[%s599 + $0x190] sm:$0xff]
        %v2239 = vld [vmem:[%s599 + $0x198] sm:$0xff]
        %v2240 = vld [vmem:[%s599 + $0x1a0] sm:$0xff]
        %v2241 = vld [vmem:[%s599 + $0x1a8] sm:$0xff]
        %v2242 = vld [vmem:[%s599 + $0x1b0] sm:$0xff]
        %v2243 = vld [vmem:[%s599 + $0x1b8] sm:$0xff]
        %v2244 = vld [vmem:[%s599 + $0x1c0] sm:$0xff]
        %v2245 = vld [vmem:[%s599 + $0x1c8] sm:$0xff]
        %v2246 = vld [vmem:[%s599 + $0x1d0] sm:$0xff]
        %v2247 = vld [vmem:[%s599 + $0x1d8] sm:$0xff]
        %v2248 = vld [vmem:[%s599 + $0x1e0] sm:$0xff]
        %v2249 = vld [vmem:[%s599 + $0x1e8] sm:$0xff]
        %v2250 = vld [vmem:[%s599 + $0x1f0] sm:$0xff]
        %v2251 = vld [vmem:[%s599 + $0x1f8] sm:$0xff]
        %2252 = vmatprep.subr.mxu0 0.0
        %2253 = vmatpush1.msra.mxu0 %v2188
        %2254 = vmatprep.subr.mxu0 0.0
        %2255 = vmatpush1.msra.mxu0 %v2189
        %2256 = vmatprep.subr.mxu0 0.0
        %2257 = vmatpush1.msra.mxu0 %v2190
        %2258 = vmatprep.subr.mxu0 0.0
        %2259 = vmatpush1.msra.mxu0 %v2191
        %2260 = vmatprep.subr.mxu0 0.0
        %2261 = vmatpush1.msra.mxu0 %v2192
        %2262 = vmatprep.subr.mxu0 0.0
        %2263 = vmatpush1.msra.mxu0 %v2193
        %2264 = vmatprep.subr.mxu0 0.0
        %2265 = vmatpush1.msra.mxu0 %v2194
        %2266 = vmatprep.subr.mxu0 0.0
        %2267 = vmatpush1.msra.mxu0 %v2195
        %2268 = vmatprep.subr.mxu0 0.0
        %2269 = vmatpush1.msra.mxu0 %v2196
        %2270 = vmatprep.subr.mxu0 0.0
        %2271 = vmatpush1.msra.mxu0 %v2197
        %2272 = vmatprep.subr.mxu0 0.0
        %2273 = vmatpush1.msra.mxu0 %v2198
        %2274 = vmatprep.subr.mxu0 0.0
        %2275 = vmatpush1.msra.mxu0 %v2199
        %2276 = vmatprep.subr.mxu0 0.0
        %2277 = vmatpush1.msra.mxu0 %v2200
        %2278 = vmatprep.subr.mxu0 0.0
        %2279 = vmatpush1.msra.mxu0 %v2201
        %2280 = vmatprep.subr.mxu0 0.0
        %2281 = vmatpush1.msra.mxu0 %v2202
        %2282 = vmatprep.subr.mxu0 0.0
        %2283 = vmatpush1.msra.mxu0 %v2203
        %2284 = vmatprep.subr.mxu0 0.0
        %2285 = vmatpush1.msra.mxu0 %v2204
        %2286 = vmatprep.subr.mxu0 0.0
        %2287 = vmatpush1.msra.mxu0 %v2205
        %2288 = vmatprep.subr.mxu0 0.0
        %2289 = vmatpush1.msra.mxu0 %v2206
        %2290 = vmatprep.subr.mxu0 0.0
        %2291 = vmatpush1.msra.mxu0 %v2207
        %2292 = vmatprep.subr.mxu0 0.0
        %2293 = vmatpush1.msra.mxu0 %v2208
        %2294 = vmatprep.subr.mxu0 0.0
        %2295 = vmatpush1.msra.mxu0 %v2209
        %2296 = vmatprep.subr.mxu0 0.0
        %2297 = vmatpush1.msra.mxu0 %v2210
        %2298 = vmatprep.subr.mxu0 0.0
        %2299 = vmatpush1.msra.mxu0 %v2211
        %2300 = vmatprep.subr.mxu0 0.0
        %2301 = vmatpush1.msra.mxu0 %v2212
        %2302 = vmatprep.subr.mxu0 0.0
        %2303 = vmatpush1.msra.mxu0 %v2213
        %2304 = vmatprep.subr.mxu0 0.0
        %2305 = vmatpush1.msra.mxu0 %v2214
        %2306 = vmatprep.subr.mxu0 0.0
        %2307 = vmatpush1.msra.mxu0 %v2215
        %2308 = vmatprep.subr.mxu0 0.0
        %2309 = vmatpush1.msra.mxu0 %v2216
        %2310 = vmatprep.subr.mxu0 0.0
        %2311 = vmatpush1.msra.mxu0 %v2217
        %2312 = vmatprep.subr.mxu0 0.0
        %2313 = vmatpush1.msra.mxu0 %v2218
        %2314 = vmatprep.subr.mxu0 0.0
        %2315 = vmatpush1.msra.mxu0 %v2219
        %2316 = vmatprep.mubr.f32.mxu0 %v2073
        %2317 = vmatmul.mubr.f32.gmra.mrb[0].mxu0 %v2071
        %v2318 = vpop.f32.mrb[0].mxu0
        %v2319 = vadd.f32 0.0, %v2318
        %v2320 = vpop.f32.mrb[0].mxu0
        %2321 = vdwg.mxu0
        %2322 = vmatprep.subr.mxu0 0.0
        %2323 = vmatpush1.msra.mxu0 %v2220
        %2324 = vmatprep.subr.mxu0 0.0
        %2325 = vmatpush1.msra.mxu0 %v2221
        %2326 = vmatprep.subr.mxu0 0.0
        %2327 = vmatpush1.msra.mxu0 %v2222
        %2328 = vmatprep.subr.mxu0 0.0
        %2329 = vmatpush1.msra.mxu0 %v2223
        %2330 = vmatprep.subr.mxu0 0.0
        %2331 = vmatpush1.msra.mxu0 %v2224
        %2332 = vmatprep.subr.mxu0 0.0
        %2333 = vmatpush1.msra.mxu0 %v2225
        %2334 = vmatprep.subr.mxu0 0.0
        %2335 = vmatpush1.msra.mxu0 %v2226
        %2336 = vmatprep.subr.mxu0 0.0
        %2337 = vmatpush1.msra.mxu0 %v2227
        %2338 = vmatprep.subr.mxu0 0.0
        %2339 = vmatpush1.msra.mxu0 %v2228
        %2340 = vmatprep.subr.mxu0 0.0
        %2341 = vmatpush1.msra.mxu0 %v2229
        %2342 = vmatprep.subr.mxu0 0.0
        %2343 = vmatpush1.msra.mxu0 %v2230
        %2344 = vmatprep.subr.mxu0 0.0
        %2345 = vmatpush1.msra.mxu0 %v2231
        %2346 = vmatprep.subr.mxu0 0.0
        %2347 = vmatpush1.msra.mxu0 %v2232
        %2348 = vmatprep.subr.mxu0 0.0
        %2349 = vmatpush1.msra.mxu0 %v2233
        %2350 = vmatprep.subr.mxu0 0.0
        %2351 = vmatpush1.msra.mxu0 %v2234
        %2352 = vmatprep.subr.mxu0 0.0
        %2353 = vmatpush1.msra.mxu0 %v2235
        %2354 = vmatprep.subr.mxu0 0.0
        %2355 = vmatpush1.msra.mxu0 %v2236
        %2356 = vmatprep.subr.mxu0 0.0
        %2357 = vmatpush1.msra.mxu0 %v2237
        %2358 = vmatprep.subr.mxu0 0.0
        %2359 = vmatpush1.msra.mxu0 %v2238
        %2360 = vmatprep.subr.mxu0 0.0
        %2361 = vmatpush1.msra.mxu0 %v2239
        %2362 = vmatprep.subr.mxu0 0.0
        %2363 = vmatpush1.msra.mxu0 %v2240
        %2364 = vmatprep.subr.mxu0 0.0
        %2365 = vmatpush1.msra.mxu0 %v2241
        %2366 = vmatprep.subr.mxu0 0.0
        %2367 = vmatpush1.msra.mxu0 %v2242
        %2368 = vmatprep.subr.mxu0 0.0
        %2369 = vmatpush1.msra.mxu0 %v2243
        %2370 = vmatprep.subr.mxu0 0.0
        %2371 = vmatpush1.msra.mxu0 %v2244
        %2372 = vmatprep.subr.mxu0 0.0
        %2373 = vmatpush1.msra.mxu0 %v2245
        %2374 = vmatprep.subr.mxu0 0.0
        %2375 = vmatpush1.msra.mxu0 %v2246
        %2376 = vmatprep.subr.mxu0 0.0
        %2377 = vmatpush1.msra.mxu0 %v2247
        %2378 = vmatprep.subr.mxu0 0.0
        %2379 = vmatpush1.msra.mxu0 %v2248
        %2380 = vmatprep.subr.mxu0 0.0
        %2381 = vmatpush1.msra.mxu0 %v2249
        %2382 = vmatprep.subr.mxu0 0.0
        %2383 = vmatpush1.msra.mxu0 %v2250
        %2384 = vmatprep.subr.mxu0 0.0
        %2385 = vmatpush1.msra.mxu0 %v2251
        %2386 = vmatprep.mubr.f32.mxu0 %v2144
        %2387 = vmatmul.mubr.f32.gmra.mrb[0].mxu0 %v2142
        %v2388 = vpop.f32.mrb[0].mxu0
        %v2389 = vadd.f32 %v2319, %v2388
        %v2390 = vpop.f32.mrb[0].mxu0
        %2391 = vdwg.mxu0
        %v2394 = vunpack.c.l.s4 1966171168
        %v2395 = vunpack.c.0.s8 %v2394
        %v2396 = vlaneseq
        %v2397 = vshrl.u32 %v2396, 7
        %v2398 = vsub.s32 %v2395, %v2397
        %v2399 = vrot.slane %v2389, %v2398
        %v2400 = vcombine.high %v2399, %v2399
        %v2402 = vunpack.c.l.s4 1966171168
        %v2403 = vunpack.c.0.s8 %v2402
        %v2404 = vlaneseq
        %v2405 = vshrl.u32 %v2404, 7
        %v2406 = vsub.s32 %v2403, %v2405
        %v2407 = vrot.slane %v2399, %v2406
        %v2409 = vunpack.c.l.s4 1966171168
        %v2410 = vunpack.c.0.s8 %v2409
        %v2411 = vlaneseq
        %v2412 = vshrl.u32 %v2411, 7
        %v2413 = vsub.s32 %v2410, %v2412
        %v2414 = vrot.slane %v2400, %v2413
        %p2417 = scmp.eq.s32.totalorder %s45, 0
        // Predicated region
        $region93: #{osme_mamc_forward.1} parent=55 // pred_check
          %p2418 = pneg %p2417
        $region94: #{osme_mamc_forward.1} parent=55 // pred_check_branch
          %2420 = sbr.rel (%p2418) target = $region96
        $region95: #{osme_mamc_forward.1} parent=55 // pred_region
          %v2421 = vld [vmem:[#allocation16] sm:$0x1]
          %vm2422 = vcmask 8192
          %2423 = vst.msk [vmem:[#allocation17] sm:$0x1] %vm2422, %v2421
          %2424 = vst.msk [vmem:[#allocation17 + $0x1] sm:$0x1] %vm2422, %v2421
        $region96: #{osme_mamc_forward.1} parent=55 // pred_fallthru
          _
        %v2425 = vld [vmem:[#allocation17] sm:$0x1]
        %v2426 = vld [vmem:[#allocation17 + $0x1] sm:$0x1]
        %v2427 = vadd.f32 %v2425, %v2407
        %v2428 = vadd.f32 %v2426, %v2414
        %vm2429 = vcmask 8192
        %2430 = vst.msk [vmem:[#allocation17] sm:$0x1] %vm2429, %v2427
        %2431 = vst.msk [vmem:[#allocation17 + $0x1] sm:$0x1] %vm2429, %v2428
        %p2432 = scmp.eq.s32.totalorder %s45, 1
        // Predicated region
        $region97: #{osme_mamc_forward.1} parent=55 // pred_check
          %p2433 = pneg %p2432
        $region98: #{osme_mamc_forward.1} parent=55 // pred_check_branch
          %2435 = sbr.rel (%p2433) target = $region100
        $region99: #{osme_mamc_forward.1} parent=55 // pred_region
          %v2436 = vlaneseq
          %v2437 = vand.u32 %v2436, 127
          %v2438 = vld [vmem:[#allocation17] sm:$0x1]
          %v2439 = vld [vmem:[#allocation17 + $0x1] sm:$0x1]
          %vm2440 = vcmp.eq.s32.totalorder %v2437, 1
          %v2441 = vsel %vm2440, 0.15, 0.0
          %v2442 = vsub.f32 %v2438, %v2441
          %v2443 = vsub.f32 %v2439, %v2441
          %2444 = vst.msk [vmem:[#allocation17] sm:$0x1] %vm2429, %v2442
          %2445 = vst.msk [vmem:[#allocation17 + $0x1] sm:$0x1] %vm2429, %v2443
        $region100: #{osme_mamc_forward.1} parent=55 // pred_fallthru
          _
        %s2446 = sand.u32 %s40, 1
        %s2447 = scalar_lea.sflag [#allocation19], %s2446
        %s2448 = sand.u32 %s317, 1
        %s2449 = smul.addr %s2448, 8
        %s2450 = scalar_lea.vmem [#allocation18], %s2449
        %s2451 = sand.u32 %s40, 1
        %s2452 = scalar_lea.sflag [#allocation19], %s2451
        %s2453 = sand.u32 %s345, 1
        %s2454 = smul.addr %s2453, 4
        %s2455 = scalar_lea.vmem [#allocation20], %s2454
        // Predicated region
        $region101: #{osme_mamc_forward.1} parent=55 // pred_check
          %p2456 = pneg %p299
        $region102: #{osme_mamc_forward.1} parent=55 // pred_check_branch
          %2458 = sbr.rel (%p2456) target = $region104
        $region103: #{osme_mamc_forward.1} parent=55 // pred_region
          %s2459 = smul.u32 2, %s44
          %s2461 = ssub.s32 32, 32
          %2462 = vsyncadd [#allocation4], %s2461
          %s2463 = smul.addr %s2459, 16
          %s2464 = scalar_lea.hbm %s9, %s2463
          %s2465 = sshll.u32 [#allocation17], 4
          %s2466 = int_to_ptr.vmem [resolvable:$true] %s2465
          %2471 = dma.vmem_to_hbm [thread:$0]  %s2466, 32, %s2464, [#allocation4], 16, 16, 1
        $region104: #{osme_mamc_forward.1} parent=55 // pred_fallthru
          _
        // Predicated region
        $region105: #{osme_mamc_forward.1} parent=55 // pred_check
          %p2472 = pneg %p327
        $region106: #{osme_mamc_forward.1} parent=55 // pred_check_branch
          %2474 = sbr.rel (%p2472) target = $region108
        $region107: #{osme_mamc_forward.1} parent=55 // pred_region
          %s2475 = smul.u32 2, %s44
          %s2477 = ssub.s32 128, 128
          %2478 = vsyncadd %s2447, %s2477
          %s2479 = smul.addr %s2475, 4
          %s2480 = smul.addr %s45, 8
          %s2481 = sadd.s32 %s2479, %s2480
          %s2482 = smul.addr %s2481, 16
          %s2483 = scalar_lea.hbm %s10, %s2482
          %s2484 = sshll.u32 %s2450, 4
          %s2485 = int_to_ptr.vmem [resolvable:$true] %s2484
          %2490 = dma.vmem_to_hbm [thread:$0]  %s2485, 128, %s2483, %s2447, 64, 64, 4
        $region108: #{osme_mamc_forward.1} parent=55 // pred_fallthru
          _
        // Predicated region
        $region109: #{osme_mamc_forward.1} parent=55 // pred_check
          %p2491 = pneg %p355
        $region110: #{osme_mamc_forward.1} parent=55 // pred_check_branch
          %2493 = sbr.rel (%p2491) target = $region112
        $region111: #{osme_mamc_forward.1} parent=55 // pred_region
          %s2494 = smul.u32 2, %s44
          %s2496 = ssub.s32 64, 64
          %2497 = vsyncadd %s2452, %s2496
          %s2498 = smul.addr %s2494, 2
          %s2499 = smul.addr %s45, 4
          %s2500 = sadd.s32 %s2498, %s2499
          %s2501 = smul.addr %s2500, 16
          %s2502 = scalar_lea.hbm %s11, %s2501
          %s2503 = sshll.u32 %s2455, 4
          %s2504 = int_to_ptr.vmem [resolvable:$true] %s2503
          %2509 = dma.vmem_to_hbm [thread:$0]  %s2504, 64, %s2502, %s2452, 32, 32, 2
        $region112: #{osme_mamc_forward.1} parent=55 // pred_fallthru
          _
        // Predicated region
        $region113: #{osme_mamc_forward.1} parent=55 // pred_check
          %p2510 = pneg %p299
        $region114: #{osme_mamc_forward.1} parent=55 // pred_check_branch
          %2512 = sbr.rel (%p2510) target = $region116
        $region115: #{osme_mamc_forward.1} parent=55 // pred_region
          %2513 = dma.done [#allocation4], 32
        $region116: #{osme_mamc_forward.1} parent=55 // pred_fallthru
          _
      $region56: #{osme_mamc_forward.1} parent=5 // pred_fallthru
        _
      %p2514 = scmp.le.s32.totalorder 2, %s35
      // Predicated region
      $region117: #{osme_mamc_forward.1} parent=5 // pred_check
        %p2515 = pneg %p2514
      $region118: #{osme_mamc_forward.1} parent=5 // pred_check_branch
        %2517 = sbr.rel (%p2515) target = $region120
      $region119: #{osme_mamc_forward.1} parent=5 // pred_region
        %s2518 = ssub.s32 %s35, 2
        // Predicated region
        $region121: #{osme_mamc_forward.1} parent=119 // pred_check
          %p2519 = pneg %p333
        $region122: #{osme_mamc_forward.1} parent=119 // pred_check_branch
          %2521 = sbr.rel (%p2519) target = $region124
        $region123: #{osme_mamc_forward.1} parent=119 // pred_region
          %s2522 = sand.u32 %s41, 1
          %s2523 = scalar_lea.sflag [#allocation19], %s2522
          %s2524 = sand.u32 %s318, 1
          %s2525 = smul.addr %s2524, 8
          %s2526 = scalar_lea.vmem [#allocation18], %s2525
          %2527 = dma.done %s2523, 128
        $region124: #{osme_mamc_forward.1} parent=119 // pred_fallthru
          _
        // Predicated region
        $region125: #{osme_mamc_forward.1} parent=119 // pred_check
          %p2528 = pneg %p361
        $region126: #{osme_mamc_forward.1} parent=119 // pred_check_branch
          %2530 = sbr.rel (%p2528) target = $region128
        $region127: #{osme_mamc_forward.1} parent=119 // pred_region
          %s2531 = sand.u32 %s41, 1
          %s2532 = scalar_lea.sflag [#allocation19], %s2531
          %s2533 = sand.u32 %s346, 1
          %s2534 = smul.addr %s2533, 4
          %s2535 = scalar_lea.vmem [#allocation20], %s2534
          %2536 = dma.done %s2532, 64
        $region128: #{osme_mamc_forward.1} parent=119 // pred_fallthru
          _
      $region120: #{osme_mamc_forward.1} parent=5 // pred_fallthru
        _
    $region6: #{osme_mamc_forward.1} parent=1 // loop_footer
      %s39 = sadd.s32 1, %s35
    $region7: #{osme_mamc_forward.1} parent=1 // loop_footer_branch
      %34 = sbr.rel target = $region3
    $region8: #{osme_mamc_forward.1} parent=1 // loop_exit
      _
    %2537 = vsyncpa [#allocation3], 1
    %s2538 = scalar_lea.sflag [#allocation3], 1
    %2539 = vsyncpa %s2538, 1
    %2540 = vsyncpa [#allocation6], 1
    %s2541 = scalar_lea.sflag [#allocation6], 1
    %2542 = vsyncpa %s2541, 1
    %2543 = vsyncpa [#allocation9], 1
    %s2544 = scalar_lea.sflag [#allocation9], 1
    %2545 = vsyncpa %s2544, 1
    %2546 = vsyncpa [#allocation12], 1
    %s2547 = scalar_lea.sflag [#allocation12], 1
    %2548 = vsyncpa %s2547, 1
    %2549 = vsyncpa [#allocation15], 1
    %s2550 = scalar_lea.sflag [#allocation15], 1
    %2551 = vsyncpa %s2550, 1
    %2552 = vsyncpa [#allocation4], 1
    %s2553 = scalar_lea.sflag [#allocation4], 1
    %2554 = vsyncpa %s2553, 1
    %2555 = vsyncpa [#allocation19], 1
    %s2556 = scalar_lea.sflag [#allocation19], 1
    %2557 = vsyncpa %s2556, 1

</llo_original>
